<compile_context>
chip_gen: v6e
topology: v6e:2x2x1
jax: 0.10.0
libtpu: 0.0.40
codegen_flags: <defaults>
</compile_context>

<pallas_src>
import jax
import jax.numpy as jnp
import numpy as np
from jax.experimental import pallas as pl
from jax.experimental.pallas import tpu as pltpu

GN_EPS = 1e-5  # nn.GroupNorm default


def _silu(v):
    return v * jax.nn.sigmoid(v)


def resblock_kernel(x_ref, eo_ref, bmat_ref,
                    gn1_w_ref, gn1_b_ref, w1_ref,
                    gn2_w_ref, gn2_b_ref, w2_ref, b2_ref,
                    out_ref):
    x = x_ref[0]                       # (C, T) f32
    T = x.shape[1]
    inv_t = 1.0 / T
    bmat = bmat_ref[...]               # (C, C) group-averaging matrix (f32)

    def group_norm(h, w, b):
        # Per-channel sums (lane/XLU reduction), one merged (C,C)x(C,2) matmul
        # to average within each group, then the GN affine folded into a single
        # per-channel scale/shift so the (C,T)-wide apply is 2 VPU ops/elem.
        stats = jnp.concatenate(
            [jnp.sum(h, axis=1, keepdims=True),
             jnp.sum(h * h, axis=1, keepdims=True)], axis=1) * inv_t   # (C, 2)
        gstats = jnp.dot(bmat, stats, preferred_element_type=jnp.float32)
        gmean, gmsq = gstats[:, 0:1], gstats[:, 1:2]
        var = jnp.maximum(gmsq - gmean * gmean, 0.0)   # guard cancellation
        scale = jax.lax.rsqrt(var + GN_EPS) * w        # (C, 1)
        shift = b - gmean * scale                      # (C, 1)
        return h * scale + shift

    # ---- in_layers: GroupNorm -> SiLU -> Conv1d(k=1)  (bias folded into eo) ----
    h = _silu(group_norm(x, gn1_w_ref[...], gn1_b_ref[...]))
    h = jnp.dot(w1_ref[...], h.astype(jnp.bfloat16),
                preferred_element_type=jnp.float32)
    h = h + eo_ref[0]                  # eo = emb_layers(emb) + conv1 bias, (Cout, 1)

    # ---- out_layers: GroupNorm -> SiLU -> Dropout -> Conv1d(k=3, pad=1) ----
    # TODO(synk): dropout treated as eval-mode identity (no RNG mask applied).
    h2 = _silu(group_norm(h, gn2_w_ref[...], gn2_b_ref[...]))

    col = jax.lax.broadcasted_iota(jnp.int32, (1, T), 1)     # (1, T) boundary masks
    m_first = (col > 0).astype(h2.dtype)
    m_last = (col < T - 1).astype(h2.dtype)
    h_prev = pltpu.roll(h2, shift=1, axis=1) * m_first       # h2[:, t-1], zero at t=0
    h_next = pltpu.roll(h2, shift=T - 1, axis=1) * m_last    # h2[:, t+1], zero at t=T-1

    # Fused 3-tap conv: one K=3*Cout matmul against [h_prev; h2; h_next].
    # Cast each tap to bf16 before the concat so the sublane copy is half-width.
    h_cat = jnp.concatenate([h_prev.astype(jnp.bfloat16),
                             h2.astype(jnp.bfloat16),
                             h_next.astype(jnp.bfloat16)], axis=0)      # (3C, T)
    conv = jnp.dot(w2_ref[...], h_cat,
                   preferred_element_type=jnp.float32) + b2_ref[...]

    # skip_connection = Identity (out_channels == channels)
    out_ref[0] = x + conv


def resblock_forward(x, emb, params):
    B, C, T = x.shape
    Cout = params["w1"].shape[0]
    assert Cout == C, "Identity-skip path assumes out_channels == channels"
    G = params["num_groups"]
    gs = C // G

    # Group-membership averaging matrix (valid for both GNs while Cout == C).
    gid = jnp.arange(C) // gs
    bmat = (gid[:, None] == gid[None, :]).astype(jnp.float32) / gs

    # emb_layers hoisted: one real batched (B,E)x(E,Cout) matmul in XLA, with
    # the Conv1d(k=1) bias folded in so the kernel adds a single (Cout, 1).
    eo = _silu(emb) @ params["w_emb"].T + params["b_emb"] + params["b1"]
    eo = eo.reshape(B, Cout, 1).astype(jnp.float32)

    # Ship matmul weights as bf16 (f32 accumulation in-kernel).
    w1 = params["w1"].astype(jnp.bfloat16)                              # (Cout, C)
    # (Cout, Cin, 3) -> (Cout, 3*Cin), tap-major to match [h_prev; h; h_next].
    w2 = jnp.transpose(params["w2"], (0, 2, 1)).reshape(Cout, 3 * Cout)
    w2 = w2.astype(jnp.bfloat16)

    def full_spec(shape):
        nd = len(shape)
        # Constant blocks: index_map returns the same block every grid step, so
        # Pallas re-uses the resident copy instead of re-DMAing per batch.
        # NOTE: at production widths these should also be single-buffered
        # (pipeline_mode=pl.Buffered(1)) to halve weight VMEM.
        return pl.BlockSpec(shape, lambda b, nd=nd: (0,) * nd)

    args = (
        x,
        eo,
        bmat,
        params["gn1_w"].reshape(C, 1), params["gn1_b"].reshape(C, 1),
        w1,
        params["gn2_w"].reshape(Cout, 1), params["gn2_b"].reshape(Cout, 1),
        w2, params["b2"].reshape(Cout, 1),
    )

    in_specs = [
        pl.BlockSpec((1, C, T), lambda b: (b, 0, 0)),
        pl.BlockSpec((1, Cout, 1), lambda b: (b, 0, 0)),
        full_spec((C, C)),
        full_spec((C, 1)), full_spec((C, 1)),
        full_spec((Cout, C)),
        full_spec((Cout, 1)), full_spec((Cout, 1)),
        full_spec((Cout, 3 * Cout)), full_spec((Cout, 1)),
    ]

    return pl.pallas_call(
        resblock_kernel,
        out_shape=jax.ShapeDtypeStruct((B, Cout, T), jnp.float32),
        grid_spec=pltpu.PrefetchScalarGridSpec(
            num_scalar_prefetch=0,
            grid=(B,),
            in_specs=in_specs,
            out_specs=pl.BlockSpec((1, Cout, T), lambda b: (b, 0, 0)),
        ),
        compiler_params=pltpu.CompilerParams(
            dimension_semantics=("parallel",)),
    )(*args)


def resblock_ref(x, emb, params):
    """Plain-JAX reference (mirrors the PyTorch forward, all-f32)."""
    G = params["num_groups"]

    def gn(h, w, b):
        B, C, T = h.shape
        gs = C // G
        hr = h.reshape(B, G, gs * T)
        mean = hr.mean(axis=2, keepdims=True)
        var = ((hr - mean) ** 2).mean(axis=2, keepdims=True)
        hn = ((hr - mean) / jnp.sqrt(var + GN_EPS)).reshape(B, C, T)
        return hn * w[None, :, None] + b[None, :, None]

    h = gn(x, params["gn1_w"], params["gn1_b"])
    h = _silu(h)
    h = jnp.einsum("oi,bit->bot", params["w1"], h) + params["b1"][None, :, None]

    eo = _silu(emb) @ params["w_emb"].T + params["b_emb"]
    h = h + eo[:, :, None]

    h2 = gn(h, params["gn2_w"], params["gn2_b"])
    h2 = _silu(h2)
    T = x.shape[2]
    hp = jnp.pad(h2, ((0, 0), (0, 0), (1, 1)))
    conv = sum(
        jnp.einsum("oi,bit->bot", params["w2"][:, :, k], hp[:, :, k:k + T])
        for k in range(3)
    ) + params["b2"][None, :, None]
    return x + conv


if __name__ == "__main__":
    B, C, E, T = 2, 64, 128, 128   # channels, emb_channels, seq len
    Cout = C                        # out_channels == channels -> Identity skip
    G = 32                          # normalization() = GroupNorm32(32, C)

    key = jax.random.PRNGKey(0)
    ks = jax.random.split(key, 12)

    params = {
        "num_groups": G,
        "gn1_w": 1.0 + 0.1 * jax.random.normal(ks[0], (C,), jnp.float32),
        "gn1_b": 0.1 * jax.random.normal(ks[1], (C,), jnp.float32),
        "w1": 0.1 * jax.random.normal(ks[2], (Cout, C), jnp.float32),
        "b1": 0.1 * jax.random.normal(ks[3], (Cout,), jnp.float32),
        "w_emb": 0.1 * jax.random.normal(ks[4], (Cout, E), jnp.float32),
        "b_emb": 0.1 * jax.random.normal(ks[5], (Cout,), jnp.float32),
        "gn2_w": 1.0 + 0.1 * jax.random.normal(ks[6], (Cout,), jnp.float32),
        "gn2_b": 0.1 * jax.random.normal(ks[7], (Cout,), jnp.float32),
        "w2": 0.1 * jax.random.normal(ks[8], (Cout, Cout, 3), jnp.float32),
        "b2": 0.1 * jax.random.normal(ks[9], (Cout,), jnp.float32),
    }

    x = jax.random.normal(ks[10], (B, C, T), jnp.float32)
    emb = jax.random.normal(ks[11], (B, E), jnp.float32)

    out = jax.block_until_ready(resblock_forward(x, emb, params))
    ref = jax.block_until_ready(resblock_ref(x, emb, params))

    # bf16 MXU operands (f32 accumulate) vs. the all-f32 reference -> ~1e-2 tol.
    np.testing.assert_allclose(np.asarray(out), np.asarray(ref),
                               rtol=2e-2, atol=2e-2)
    print("KERNEL_OK")
</pallas_src>

<mosaic_0001>
module attributes {stable_mosaic.version = 11 : i64} {
  func.func @resblock_kernel(%arg0: i32, %arg1: memref<1x64x128xf32, #tpu.memory_space<vmem>>, %arg2: memref<1x64x1xf32, #tpu.memory_space<vmem>>, %arg3: memref<64x64xf32, #tpu.memory_space<vmem>>, %arg4: memref<64x1xf32, #tpu.memory_space<vmem>>, %arg5: memref<64x1xf32, #tpu.memory_space<vmem>>, %arg6: memref<64x64xbf16, #tpu.memory_space<vmem>>, %arg7: memref<64x1xf32, #tpu.memory_space<vmem>>, %arg8: memref<64x1xf32, #tpu.memory_space<vmem>>, %arg9: memref<64x192xbf16, #tpu.memory_space<vmem>>, %arg10: memref<64x1xf32, #tpu.memory_space<vmem>>, %arg11: memref<1x64x128xf32, #tpu.memory_space<vmem>>) attributes {dimension_semantics = [#tpu.dimension_semantics<parallel>], iteration_bounds = array<i64: 2>, scalar_prefetch = 0 : i64, scratch_operands = 0 : i64, tpu.core_type = #tpu.core_type<tc>, window_params = [{transform_indices = @transform_0, window_bounds = array<i64: 1, 64, 128>}, {transform_indices = @transform_1, window_bounds = array<i64: 1, 64, 1>}, {pipeline_mode = #tpu.pipeline_mode<synchronous>, transform_indices = @transform_2, window_bounds = array<i64: 64, 64>}, {pipeline_mode = #tpu.pipeline_mode<synchronous>, transform_indices = @transform_3, window_bounds = array<i64: 64, 1>}, {pipeline_mode = #tpu.pipeline_mode<synchronous>, transform_indices = @transform_4, window_bounds = array<i64: 64, 1>}, {pipeline_mode = #tpu.pipeline_mode<synchronous>, transform_indices = @transform_5, window_bounds = array<i64: 64, 64>}, {pipeline_mode = #tpu.pipeline_mode<synchronous>, transform_indices = @transform_6, window_bounds = array<i64: 64, 1>}, {pipeline_mode = #tpu.pipeline_mode<synchronous>, transform_indices = @transform_7, window_bounds = array<i64: 64, 1>}, {pipeline_mode = #tpu.pipeline_mode<synchronous>, transform_indices = @transform_8, window_bounds = array<i64: 64, 192>}, {pipeline_mode = #tpu.pipeline_mode<synchronous>, transform_indices = @transform_9, window_bounds = array<i64: 64, 1>}, {transform_indices = @transform_10, window_bounds = array<i64: 1, 64, 128>}]} {
    %c0 = arith.constant 0 : index
    %c0_0 = arith.constant 0 : index
    %c0_1 = arith.constant 0 : index
    %0 = vector.load %arg1[%c0, %c0_0, %c0_1] : memref<1x64x128xf32, #tpu.memory_space<vmem>>, vector<1x64x128xf32>
    %1 = vector.shape_cast %0 : vector<1x64x128xf32> to vector<64x128xf32>
    %c0_2 = arith.constant 0 : index
    %c0_3 = arith.constant 0 : index
    %2 = vector.load %arg3[%c0_2, %c0_3] : memref<64x64xf32, #tpu.memory_space<vmem>>, vector<64x64xf32>
    %c0_4 = arith.constant 0 : index
    %c0_5 = arith.constant 0 : index
    %3 = vector.load %arg4[%c0_4, %c0_5] : memref<64x1xf32, #tpu.memory_space<vmem>>, vector<64x1xf32>
    %c0_6 = arith.constant 0 : index
    %c0_7 = arith.constant 0 : index
    %4 = vector.load %arg5[%c0_6, %c0_7] : memref<64x1xf32, #tpu.memory_space<vmem>>, vector<64x1xf32>
    %cst = arith.constant dense<0.000000e+00> : vector<64xf32>
    %5 = vector.multi_reduction <add>, %1, %cst [1] : vector<64x128xf32> to vector<64xf32>
    %6 = vector.shape_cast %5 : vector<64xf32> to vector<64x1xf32>
    %7 = arith.mulf %1, %1 : vector<64x128xf32>
    %cst_8 = arith.constant dense<0.000000e+00> : vector<64xf32>
    %8 = vector.multi_reduction <add>, %7, %cst_8 [1] : vector<64x128xf32> to vector<64xf32>
    %9 = vector.shape_cast %8 : vector<64xf32> to vector<64x1xf32>
    %10 = tpu.concatenate %6, %9 in 1 : vector<64x1xf32>, vector<64x1xf32> -> vector<64x2xf32>
    %cst_9 = arith.constant 7.812500e-03 : f32
    %11 = vector.broadcast %cst_9 : f32 to vector<64x2xf32>
    %12 = arith.mulf %10, %11 : vector<64x2xf32>
    %cst_10 = arith.constant dense<0.000000e+00> : vector<64x2xf32>
    %13 = tpu.matmul %2, %12, %cst_10 {dimension_numbers = #tpu.dot_dimension_numbers<[1], [0], [0], [1], [0, 0, 1, 1], [], []>} : vector<64x64xf32>, vector<64x2xf32>, vector<64x2xf32> -> vector<64x2xf32>
    %14 = vector.extract_strided_slice %13 {offsets = [0, 0], sizes = [64, 1], strides = [1, 1]} : vector<64x2xf32> to vector<64x1xf32>
    %15 = vector.extract_strided_slice %13 {offsets = [0, 1], sizes = [64, 1], strides = [1, 1]} : vector<64x2xf32> to vector<64x1xf32>
    %16 = arith.mulf %14, %14 : vector<64x1xf32>
    %17 = arith.subf %15, %16 : vector<64x1xf32>
    %cst_11 = arith.constant 0.000000e+00 : f32
    %18 = vector.broadcast %cst_11 : f32 to vector<64x1xf32>
    %19 = arith.maximumf %17, %18 : vector<64x1xf32>
    %cst_12 = arith.constant 9.99999974E-6 : f32
    %20 = vector.broadcast %cst_12 : f32 to vector<64x1xf32>
    %21 = arith.addf %19, %20 : vector<64x1xf32>
    %22 = math.rsqrt %21 : vector<64x1xf32>
    %23 = arith.mulf %22, %3 : vector<64x1xf32>
    %24 = arith.mulf %14, %23 : vector<64x1xf32>
    %25 = arith.subf %4, %24 : vector<64x1xf32>
    %26 = vector.broadcast %23 : vector<64x1xf32> to vector<64x128xf32>
    %27 = arith.mulf %1, %26 : vector<64x128xf32>
    %28 = vector.broadcast %25 : vector<64x1xf32> to vector<64x128xf32>
    %29 = arith.addf %27, %28 : vector<64x128xf32>
    %30 = arith.negf %29 : vector<64x128xf32>
    %31 = math.exp %30 : vector<64x128xf32>
    %cst_13 = arith.constant 1.000000e+00 : f32
    %32 = vector.broadcast %cst_13 : f32 to vector<64x128xf32>
    %33 = arith.addf %32, %31 : vector<64x128xf32>
    %34 = arith.divf %32, %33 : vector<64x128xf32>
    %35 = arith.mulf %29, %34 : vector<64x128xf32>
    %c0_14 = arith.constant 0 : index
    %c0_15 = arith.constant 0 : index
    %36 = vector.load %arg6[%c0_14, %c0_15] : memref<64x64xbf16, #tpu.memory_space<vmem>>, vector<64x64xbf16>
    %37 = arith.truncf %35 : vector<64x128xf32> to vector<64x128xbf16>
    %cst_16 = arith.constant dense<0.000000e+00> : vector<64x128xf32>
    %38 = tpu.matmul %36, %37, %cst_16 {dimension_numbers = #tpu.dot_dimension_numbers<[1], [0], [0], [1], [0, 0, 1, 1], [], []>} : vector<64x64xbf16>, vector<64x128xbf16>, vector<64x128xf32> -> vector<64x128xf32>
    %c0_17 = arith.constant 0 : index
    %c0_18 = arith.constant 0 : index
    %c0_19 = arith.constant 0 : index
    %39 = vector.load %arg2[%c0_17, %c0_18, %c0_19] : memref<1x64x1xf32, #tpu.memory_space<vmem>>, vector<1x64x1xf32>
    %40 = vector.shape_cast %39 : vector<1x64x1xf32> to vector<64x1xf32>
    %41 = vector.broadcast %40 : vector<64x1xf32> to vector<64x128xf32>
    %42 = arith.addf %38, %41 : vector<64x128xf32>
    %c0_20 = arith.constant 0 : index
    %c0_21 = arith.constant 0 : index
    %43 = vector.load %arg7[%c0_20, %c0_21] : memref<64x1xf32, #tpu.memory_space<vmem>>, vector<64x1xf32>
    %c0_22 = arith.constant 0 : index
    %c0_23 = arith.constant 0 : index
    %44 = vector.load %arg8[%c0_22, %c0_23] : memref<64x1xf32, #tpu.memory_space<vmem>>, vector<64x1xf32>
    %cst_24 = arith.constant dense<0.000000e+00> : vector<64xf32>
    %45 = vector.multi_reduction <add>, %42, %cst_24 [1] : vector<64x128xf32> to vector<64xf32>
    %46 = vector.shape_cast %45 : vector<64xf32> to vector<64x1xf32>
    %47 = arith.mulf %42, %42 : vector<64x128xf32>
    %cst_25 = arith.constant dense<0.000000e+00> : vector<64xf32>
    %48 = vector.multi_reduction <add>, %47, %cst_25 [1] : vector<64x128xf32> to vector<64xf32>
    %49 = vector.shape_cast %48 : vector<64xf32> to vector<64x1xf32>
    %50 = tpu.concatenate %46, %49 in 1 : vector<64x1xf32>, vector<64x1xf32> -> vector<64x2xf32>
    %cst_26 = arith.constant 7.812500e-03 : f32
    %51 = vector.broadcast %cst_26 : f32 to vector<64x2xf32>
    %52 = arith.mulf %50, %51 : vector<64x2xf32>
    %cst_27 = arith.constant dense<0.000000e+00> : vector<64x2xf32>
    %53 = tpu.matmul %2, %52, %cst_27 {dimension_numbers = #tpu.dot_dimension_numbers<[1], [0], [0], [1], [0, 0, 1, 1], [], []>} : vector<64x64xf32>, vector<64x2xf32>, vector<64x2xf32> -> vector<64x2xf32>
    %54 = vector.extract_strided_slice %53 {offsets = [0, 0], sizes = [64, 1], strides = [1, 1]} : vector<64x2xf32> to vector<64x1xf32>
    %55 = vector.extract_strided_slice %53 {offsets = [0, 1], sizes = [64, 1], strides = [1, 1]} : vector<64x2xf32> to vector<64x1xf32>
    %56 = arith.mulf %54, %54 : vector<64x1xf32>
    %57 = arith.subf %55, %56 : vector<64x1xf32>
    %cst_28 = arith.constant 0.000000e+00 : f32
    %58 = vector.broadcast %cst_28 : f32 to vector<64x1xf32>
    %59 = arith.maximumf %57, %58 : vector<64x1xf32>
    %cst_29 = arith.constant 9.99999974E-6 : f32
    %60 = vector.broadcast %cst_29 : f32 to vector<64x1xf32>
    %61 = arith.addf %59, %60 : vector<64x1xf32>
    %62 = math.rsqrt %61 : vector<64x1xf32>
    %63 = arith.mulf %62, %43 : vector<64x1xf32>
    %64 = arith.mulf %54, %63 : vector<64x1xf32>
    %65 = arith.subf %44, %64 : vector<64x1xf32>
    %66 = vector.broadcast %63 : vector<64x1xf32> to vector<64x128xf32>
    %67 = arith.mulf %42, %66 : vector<64x128xf32>
    %68 = vector.broadcast %65 : vector<64x1xf32> to vector<64x128xf32>
    %69 = arith.addf %67, %68 : vector<64x128xf32>
    %70 = arith.negf %69 : vector<64x128xf32>
    %71 = math.exp %70 : vector<64x128xf32>
    %cst_30 = arith.constant 1.000000e+00 : f32
    %72 = vector.broadcast %cst_30 : f32 to vector<64x128xf32>
    %73 = arith.addf %72, %71 : vector<64x128xf32>
    %74 = arith.divf %72, %73 : vector<64x128xf32>
    %75 = arith.mulf %69, %74 : vector<64x128xf32>
    %76 = tpu.iota {dimensions = array<i32: 1>} : vector<1x128xi32>
    %c0_i32 = arith.constant 0 : i32
    %77 = vector.broadcast %c0_i32 : i32 to vector<1x128xi32>
    %78 = arith.cmpi sgt, %76, %77 : vector<1x128xi32>
    %79 = arith.extui %78 : vector<1x128xi1> to vector<1x128xi32>
    %80 = arith.sitofp %79 : vector<1x128xi32> to vector<1x128xf32>
    %c127_i32 = arith.constant 127 : i32
    %81 = vector.broadcast %c127_i32 : i32 to vector<1x128xi32>
    %82 = arith.cmpi slt, %76, %81 : vector<1x128xi32>
    %83 = arith.extui %82 : vector<1x128xi1> to vector<1x128xi32>
    %84 = arith.sitofp %83 : vector<1x128xi32> to vector<1x128xf32>
    %c1_i32 = arith.constant 1 : i32
    %85 = tpu.dynamic_rotate %75 by %c1_i32 dim 1 : vector<64x128xf32>, i32 -> vector<64x128xf32>
    %86 = vector.broadcast %80 : vector<1x128xf32> to vector<64x128xf32>
    %87 = arith.mulf %85, %86 : vector<64x128xf32>
    %c127_i32_31 = arith.constant 127 : i32
    %88 = tpu.dynamic_rotate %75 by %c127_i32_31 dim 1 : vector<64x128xf32>, i32 -> vector<64x128xf32>
    %89 = vector.broadcast %84 : vector<1x128xf32> to vector<64x128xf32>
    %90 = arith.mulf %88, %89 : vector<64x128xf32>
    %91 = arith.truncf %87 : vector<64x128xf32> to vector<64x128xbf16>
    %92 = arith.truncf %75 : vector<64x128xf32> to vector<64x128xbf16>
    %93 = arith.truncf %90 : vector<64x128xf32> to vector<64x128xbf16>
    %94 = tpu.concatenate %91, %92, %93 in 0 : vector<64x128xbf16>, vector<64x128xbf16>, vector<64x128xbf16> -> vector<192x128xbf16>
    %c0_32 = arith.constant 0 : index
    %c0_33 = arith.constant 0 : index
    %95 = vector.load %arg9[%c0_32, %c0_33] : memref<64x192xbf16, #tpu.memory_space<vmem>>, vector<64x192xbf16>
    %cst_34 = arith.constant dense<0.000000e+00> : vector<64x128xf32>
    %96 = tpu.matmul %95, %94, %cst_34 {dimension_numbers = #tpu.dot_dimension_numbers<[1], [0], [0], [1], [0, 0, 1, 1], [], []>} : vector<64x192xbf16>, vector<192x128xbf16>, vector<64x128xf32> -> vector<64x128xf32>
    %c0_35 = arith.constant 0 : index
    %c0_36 = arith.constant 0 : index
    %97 = vector.load %arg10[%c0_35, %c0_36] : memref<64x1xf32, #tpu.memory_space<vmem>>, vector<64x1xf32>
    %98 = vector.broadcast %97 : vector<64x1xf32> to vector<64x128xf32>
    %99 = arith.addf %96, %98 : vector<64x128xf32>
    %100 = arith.addf %1, %99 : vector<64x128xf32>
    %c0_37 = arith.constant 0 : index
    %c0_38 = arith.constant 0 : index
    %c0_39 = arith.constant 0 : index
    %101 = vector.load %arg11[%c0_37, %c0_38, %c0_39] : memref<1x64x128xf32, #tpu.memory_space<vmem>>, vector<1x64x128xf32>
    %102 = vector.shape_cast %101 : vector<1x64x128xf32> to vector<64x128xf32>
    %103 = vector.shape_cast %100 : vector<64x128xf32> to vector<1x64x128xf32>
    tpu.vector_store %arg11[%c0_37, %c0_38, %c0_39], %103 {strides = array<i32>} : memref<1x64x128xf32, #tpu.memory_space<vmem>>, vector<1x64x128xf32>,
    return
  }
  func.func @transform_0(%arg0: i32) -> (i32, i32, i32) {
    %c0_i32 = arith.constant 0 : i32
    %c0_i32_0 = arith.constant 0 : i32
    %c0_i32_1 = arith.constant 0 : i32
    return %arg0, %c0_i32, %c0_i32_0 : i32, i32, i32
  }
  func.func @transform_1(%arg0: i32) -> (i32, i32, i32) {
    %c0_i32 = arith.constant 0 : i32
    %c0_i32_0 = arith.constant 0 : i32
    %c0_i32_1 = arith.constant 0 : i32
    return %arg0, %c0_i32, %c0_i32_0 : i32, i32, i32
  }
  func.func @transform_2(%arg0: i32) -> (i32, i32) {
    %c0_i32 = arith.constant 0 : i32
    %c0_i32_0 = arith.constant 0 : i32
    %c0_i32_1 = arith.constant 0 : i32
    return %c0_i32, %c0_i32_0 : i32, i32
  }
  func.func @transform_3(%arg0: i32) -> (i32, i32) {
    %c0_i32 = arith.constant 0 : i32
    %c0_i32_0 = arith.constant 0 : i32
    %c0_i32_1 = arith.constant 0 : i32
    return %c0_i32, %c0_i32_0 : i32, i32
  }
  func.func @transform_4(%arg0: i32) -> (i32, i32) {
    %c0_i32 = arith.constant 0 : i32
    %c0_i32_0 = arith.constant 0 : i32
    %c0_i32_1 = arith.constant 0 : i32
    return %c0_i32, %c0_i32_0 : i32, i32
  }
  func.func @transform_5(%arg0: i32) -> (i32, i32) {
    %c0_i32 = arith.constant 0 : i32
    %c0_i32_0 = arith.constant 0 : i32
    %c0_i32_1 = arith.constant 0 : i32
    return %c0_i32, %c0_i32_0 : i32, i32
  }
  func.func @transform_6(%arg0: i32) -> (i32, i32) {
    %c0_i32 = arith.constant 0 : i32
    %c0_i32_0 = arith.constant 0 : i32
    %c0_i32_1 = arith.constant 0 : i32
    return %c0_i32, %c0_i32_0 : i32, i32
  }
  func.func @transform_7(%arg0: i32) -> (i32, i32) {
    %c0_i32 = arith.constant 0 : i32
    %c0_i32_0 = arith.constant 0 : i32
    %c0_i32_1 = arith.constant 0 : i32
    return %c0_i32, %c0_i32_0 : i32, i32
  }
  func.func @transform_8(%arg0: i32) -> (i32, i32) {
    %c0_i32 = arith.constant 0 : i32
    %c0_i32_0 = arith.constant 0 : i32
    %c0_i32_1 = arith.constant 0 : i32
    return %c0_i32, %c0_i32_0 : i32, i32
  }
  func.func @transform_9(%arg0: i32) -> (i32, i32) {
    %c0_i32 = arith.constant 0 : i32
    %c0_i32_0 = arith.constant 0 : i32
    %c0_i32_1 = arith.constant 0 : i32
    return %c0_i32, %c0_i32_0 : i32, i32
  }
  func.func @transform_10(%arg0: i32) -> (i32, i32, i32) {
    %c0_i32 = arith.constant 0 : i32
    %c0_i32_0 = arith.constant 0 : i32
    %c0_i32_1 = arith.constant 0 : i32
    return %arg0, %c0_i32, %c0_i32_0 : i32, i32, i32
  }
}

</mosaic_0001>

<llo_original>
// kernel: tpu_custom_call.1
$region0: #{tpu_custom_call.1}
  #allocation0 [shape = 'u32[]', space=smem, size = 0x4, offset = 0x4, fixed_abs, tag = 'smem constant byte address 0x4 - core index']
  #allocation1 [shape = 'u32[144,128]{1,0:T(1,128)}', space=vmem, size = 0x12000, scoped, tag = 'internal scratch']
  %s0 = inlined_call_operand.vmem [shape: f32[2,64,128], index: 0, kind: input, shape index: {}]
  %s1 = inlined_call_operand.vmem [shape: f32[2,64,1], index: 1, kind: input, shape index: {}]
  %s2 = inlined_call_operand.vmem [shape: f32[64,64], index: 2, kind: input, shape index: {}]
  %s3 = inlined_call_operand.vmem [shape: f32[64,1], index: 3, kind: input, shape index: {}]
  %s4 = inlined_call_operand.vmem [shape: f32[64,1], index: 4, kind: input, shape index: {}]
  %s5 = inlined_call_operand.vmem [shape: bf16[64,64], index: 5, kind: input, shape index: {}]
  %s6 = inlined_call_operand.vmem [shape: f32[64,1], index: 6, kind: input, shape index: {}]
  %s7 = inlined_call_operand.vmem [shape: f32[64,1], index: 7, kind: input, shape index: {}]
  %s8 = inlined_call_operand.vmem [shape: bf16[64,192], index: 8, kind: input, shape index: {}]
  %s9 = inlined_call_operand.vmem [shape: f32[64,1], index: 9, kind: input, shape index: {}]
  %s10 = inlined_call_operand.hbm [shape: f32[2,64,128], index: 10, kind: output, shape index: {}]
  %s11 = sld [smem:[#allocation0]]
  $region73: #{tpu_custom_call.1} parent=0
    _
  %s13 = ssub.s32 1, %s11
  %s14 = scalar_select 0, %s13, %s11
  $region1: #{tpu_custom_call.1} parent=0
    #allocation2 [shape = 'u8[65536]{0}', space=vmem, size = 0x10000, scoped, tag = 'output window, operand 0']
    #allocation3 [shape = 's32[2]{0}', space=sflag, size = 0x8, scoped, tag = 'scoped memory for tpu_custom_call.1']
    %15 = vsyncpa [#allocation3], 0
    %s16 = scalar_lea.sflag [#allocation3], 1
    %17 = vsyncpa %s16, 0
    loop: start=0, step=1, limit=4
    $region2: #{tpu_custom_call.1} parent=1 // loop_pre_header
      _
    $region3: #{tpu_custom_call.1} parent=1 // loop_header
      %s19 = sphi 0, %s23
      %p20 = scmp.ge.s32.totalorder %s19, 4
      %s29 = sphi 0, %s31
      %s32 = sphi 0, %s29
      %s33 = sphi 0, %s32
      %s49 = sphi 0, %s33
      %s55 = sphi 0, %s57
      %s58 = sphi 0, %s55
      %s59 = sphi 0, %s58
      %s75 = sphi 0, %s59
      %s79 = sphi 0, %s79
      %s81 = sphi 0, %s79
      %s82 = sphi 0, %s81
      %s96 = sphi 0, %s82
      %s100 = sphi 0, %s100
      %s102 = sphi 0, %s100
      %s103 = sphi 0, %s102
      %s117 = sphi 0, %s103
      %s121 = sphi 0, %s121
      %s123 = sphi 0, %s121
      %s124 = sphi 0, %s123
      %s138 = sphi 0, %s124
      %s142 = sphi 0, %s142
      %s144 = sphi 0, %s142
      %s145 = sphi 0, %s144
      %s159 = sphi 0, %s145
      %s163 = sphi 0, %s163
      %s165 = sphi 0, %s163
      %s166 = sphi 0, %s165
      %s180 = sphi 0, %s166
      %s184 = sphi 0, %s184
      %s186 = sphi 0, %s184
      %s187 = sphi 0, %s186
      %s201 = sphi 0, %s187
      %s205 = sphi 0, %s205
      %s207 = sphi 0, %s205
      %s208 = sphi 0, %s207
      %s222 = sphi 0, %s208
      %s226 = sphi 0, %s226
      %s228 = sphi 0, %s226
      %s229 = sphi 0, %s228
      %s243 = sphi 0, %s229
      %s249 = sphi 0, %s251
      %s252 = sphi 0, %s249
      %s253 = sphi 0, %s252
      %s269 = sphi 0, %s253
    $region4: #{tpu_custom_call.1} parent=1 // loop_header_branch
      %22 = sbr.rel (%p20) target = $region8
    $region5: #{tpu_custom_call.1} parent=1 // loop_body
      %s24 = ssub.s32 %s19, 1
      %s25 = ssub.s32 %s19, 2
      %s26 = sadd.s32 %s19, 1
      %s27 = ssub.s32 %s19, %s26
      %p28 = scmp.eq.s32.totalorder %s27, 0
      %s30 = sadd.s32 %s29, 1
      %s31 = scalar_select %p28, %s29, %s30
      %p34 = pneg %p28
      %p35 = scmp.eq.s32.totalorder %s19, 1
      %p36 = por %p34, %p35
      %p37 = scmp.ne.s32.totalorder %s29, %s32
      %p38 = scmp.eq.s32.totalorder %s19, 0
      %p39 = por %p37, %p38
      %p40 = scmp.ne.s32.totalorder %s29, %s32
      %p41 = scmp.eq.s32.totalorder %s24, 1
      %p42 = por %p40, %p41
      %p43 = scmp.ne.s32.totalorder %s32, %s33
      %p44 = scmp.eq.s32.totalorder %s24, 0
      %p45 = por %p43, %p44
      %p46 = scmp.ne.s32.totalorder %s32, %s33
      %p47 = scmp.eq.s32.totalorder %s25, 1
      %p48 = por %p46, %p47
      %p50 = scmp.ne.s32.totalorder %s33, %s49
      %p51 = scmp.eq.s32.totalorder %s25, 0
      %p52 = por %p50, %p51
      %s53 = ssub.s32 %s19, %s26
      %p54 = scmp.eq.s32.totalorder %s53, 0
      %s56 = sadd.s32 %s55, 1
      %s57 = scalar_select %p54, %s55, %s56
      %p60 = pneg %p54
      %p61 = scmp.eq.s32.totalorder %s19, 1
      %p62 = por %p60, %p61
      %p63 = scmp.ne.s32.totalorder %s55, %s58
      %p64 = scmp.eq.s32.totalorder %s19, 0
      %p65 = por %p63, %p64
      %p66 = scmp.ne.s32.totalorder %s55, %s58
      %p67 = scmp.eq.s32.totalorder %s24, 1
      %p68 = por %p66, %p67
      %p69 = scmp.ne.s32.totalorder %s58, %s59
      %p70 = scmp.eq.s32.totalorder %s24, 0
      %p71 = por %p69, %p70
      %p72 = scmp.ne.s32.totalorder %s58, %s59
      %p73 = scmp.eq.s32.totalorder %s25, 1
      %p74 = por %p72, %p73
      %p76 = scmp.ne.s32.totalorder %s59, %s75
      %p77 = scmp.eq.s32.totalorder %s25, 0
      %p78 = por %p76, %p77
      %s80 = sadd.s32 %s79, 1
      %p83 = scmp.eq.s32.totalorder %s19, 1
      %p84 = scmp.ne.s32.totalorder %s79, %s81
      %p85 = scmp.eq.s32.totalorder %s19, 0
      %p86 = por %p84, %p85
      %p87 = scmp.ne.s32.totalorder %s79, %s81
      %p88 = scmp.eq.s32.totalorder %s24, 1
      %p89 = por %p87, %p88
      %p90 = scmp.ne.s32.totalorder %s81, %s82
      %p91 = scmp.eq.s32.totalorder %s24, 0
      %p92 = por %p90, %p91
      %p93 = scmp.ne.s32.totalorder %s81, %s82
      %p94 = scmp.eq.s32.totalorder %s25, 1
      %p95 = por %p93, %p94
      %p97 = scmp.ne.s32.totalorder %s82, %s96
      %p98 = scmp.eq.s32.totalorder %s25, 0
      %p99 = por %p97, %p98
      %s101 = sadd.s32 %s100, 1
      %p104 = scmp.eq.s32.totalorder %s19, 1
      %p105 = scmp.ne.s32.totalorder %s100, %s102
      %p106 = scmp.eq.s32.totalorder %s19, 0
      %p107 = por %p105, %p106
      %p108 = scmp.ne.s32.totalorder %s100, %s102
      %p109 = scmp.eq.s32.totalorder %s24, 1
      %p110 = por %p108, %p109
      %p111 = scmp.ne.s32.totalorder %s102, %s103
      %p112 = scmp.eq.s32.totalorder %s24, 0
      %p113 = por %p111, %p112
      %p114 = scmp.ne.s32.totalorder %s102, %s103
      %p115 = scmp.eq.s32.totalorder %s25, 1
      %p116 = por %p114, %p115
      %p118 = scmp.ne.s32.totalorder %s103, %s117
      %p119 = scmp.eq.s32.totalorder %s25, 0
      %p120 = por %p118, %p119
      %s122 = sadd.s32 %s121, 1
      %p125 = scmp.eq.s32.totalorder %s19, 1
      %p126 = scmp.ne.s32.totalorder %s121, %s123
      %p127 = scmp.eq.s32.totalorder %s19, 0
      %p128 = por %p126, %p127
      %p129 = scmp.ne.s32.totalorder %s121, %s123
      %p130 = scmp.eq.s32.totalorder %s24, 1
      %p131 = por %p129, %p130
      %p132 = scmp.ne.s32.totalorder %s123, %s124
      %p133 = scmp.eq.s32.totalorder %s24, 0
      %p134 = por %p132, %p133
      %p135 = scmp.ne.s32.totalorder %s123, %s124
      %p136 = scmp.eq.s32.totalorder %s25, 1
      %p137 = por %p135, %p136
      %p139 = scmp.ne.s32.totalorder %s124, %s138
      %p140 = scmp.eq.s32.totalorder %s25, 0
      %p141 = por %p139, %p140
      %s143 = sadd.s32 %s142, 1
      %p146 = scmp.eq.s32.totalorder %s19, 1
      %p147 = scmp.ne.s32.totalorder %s142, %s144
      %p148 = scmp.eq.s32.totalorder %s19, 0
      %p149 = por %p147, %p148
      %p150 = scmp.ne.s32.totalorder %s142, %s144
      %p151 = scmp.eq.s32.totalorder %s24, 1
      %p152 = por %p150, %p151
      %p153 = scmp.ne.s32.totalorder %s144, %s145
      %p154 = scmp.eq.s32.totalorder %s24, 0
      %p155 = por %p153, %p154
      %p156 = scmp.ne.s32.totalorder %s144, %s145
      %p157 = scmp.eq.s32.totalorder %s25, 1
      %p158 = por %p156, %p157
      %p160 = scmp.ne.s32.totalorder %s145, %s159
      %p161 = scmp.eq.s32.totalorder %s25, 0
      %p162 = por %p160, %p161
      %s164 = sadd.s32 %s163, 1
      %p167 = scmp.eq.s32.totalorder %s19, 1
      %p168 = scmp.ne.s32.totalorder %s163, %s165
      %p169 = scmp.eq.s32.totalorder %s19, 0
      %p170 = por %p168, %p169
      %p171 = scmp.ne.s32.totalorder %s163, %s165
      %p172 = scmp.eq.s32.totalorder %s24, 1
      %p173 = por %p171, %p172
      %p174 = scmp.ne.s32.totalorder %s165, %s166
      %p175 = scmp.eq.s32.totalorder %s24, 0
      %p176 = por %p174, %p175
      %p177 = scmp.ne.s32.totalorder %s165, %s166
      %p178 = scmp.eq.s32.totalorder %s25, 1
      %p179 = por %p177, %p178
      %p181 = scmp.ne.s32.totalorder %s166, %s180
      %p182 = scmp.eq.s32.totalorder %s25, 0
      %p183 = por %p181, %p182
      %s185 = sadd.s32 %s184, 1
      %p188 = scmp.eq.s32.totalorder %s19, 1
      %p189 = scmp.ne.s32.totalorder %s184, %s186
      %p190 = scmp.eq.s32.totalorder %s19, 0
      %p191 = por %p189, %p190
      %p192 = scmp.ne.s32.totalorder %s184, %s186
      %p193 = scmp.eq.s32.totalorder %s24, 1
      %p194 = por %p192, %p193
      %p195 = scmp.ne.s32.totalorder %s186, %s187
      %p196 = scmp.eq.s32.totalorder %s24, 0
      %p197 = por %p195, %p196
      %p198 = scmp.ne.s32.totalorder %s186, %s187
      %p199 = scmp.eq.s32.totalorder %s25, 1
      %p200 = por %p198, %p199
      %p202 = scmp.ne.s32.totalorder %s187, %s201
      %p203 = scmp.eq.s32.totalorder %s25, 0
      %p204 = por %p202, %p203
      %s206 = sadd.s32 %s205, 1
      %p209 = scmp.eq.s32.totalorder %s19, 1
      %p210 = scmp.ne.s32.totalorder %s205, %s207
      %p211 = scmp.eq.s32.totalorder %s19, 0
      %p212 = por %p210, %p211
      %p213 = scmp.ne.s32.totalorder %s205, %s207
      %p214 = scmp.eq.s32.totalorder %s24, 1
      %p215 = por %p213, %p214
      %p216 = scmp.ne.s32.totalorder %s207, %s208
      %p217 = scmp.eq.s32.totalorder %s24, 0
      %p218 = por %p216, %p217
      %p219 = scmp.ne.s32.totalorder %s207, %s208
      %p220 = scmp.eq.s32.totalorder %s25, 1
      %p221 = por %p219, %p220
      %p223 = scmp.ne.s32.totalorder %s208, %s222
      %p224 = scmp.eq.s32.totalorder %s25, 0
      %p225 = por %p223, %p224
      %s227 = sadd.s32 %s226, 1
      %p230 = scmp.eq.s32.totalorder %s19, 1
      %p231 = scmp.ne.s32.totalorder %s226, %s228
      %p232 = scmp.eq.s32.totalorder %s19, 0
      %p233 = por %p231, %p232
      %p234 = scmp.ne.s32.totalorder %s226, %s228
      %p235 = scmp.eq.s32.totalorder %s24, 1
      %p236 = por %p234, %p235
      %p237 = scmp.ne.s32.totalorder %s228, %s229
      %p238 = scmp.eq.s32.totalorder %s24, 0
      %p239 = por %p237, %p238
      %p240 = scmp.ne.s32.totalorder %s228, %s229
      %p241 = scmp.eq.s32.totalorder %s25, 1
      %p242 = por %p240, %p241
      %p244 = scmp.ne.s32.totalorder %s229, %s243
      %p245 = scmp.eq.s32.totalorder %s25, 0
      %p246 = por %p244, %p245
      %s247 = ssub.s32 %s19, %s26
      %p248 = scmp.eq.s32.totalorder %s247, 0
      %s250 = sadd.s32 %s249, 1
      %s251 = scalar_select %p248, %s249, %s250
      %p254 = pneg %p248
      %p255 = scmp.eq.s32.totalorder %s19, 1
      %p256 = por %p254, %p255
      %p257 = scmp.ne.s32.totalorder %s249, %s252
      %p258 = scmp.eq.s32.totalorder %s19, 0
      %p259 = por %p257, %p258
      %p260 = scmp.ne.s32.totalorder %s249, %s252
      %p261 = scmp.eq.s32.totalorder %s24, 1
      %p262 = por %p260, %p261
      %p263 = scmp.ne.s32.totalorder %s252, %s253
      %p264 = scmp.eq.s32.totalorder %s24, 0
      %p265 = por %p263, %p264
      %p266 = scmp.ne.s32.totalorder %s252, %s253
      %p267 = scmp.eq.s32.totalorder %s25, 1
      %p268 = por %p266, %p267
      %p270 = scmp.ne.s32.totalorder %s253, %s269
      %p271 = scmp.eq.s32.totalorder %s25, 0
      %p272 = por %p270, %p271
      %p273 = scmp.le.s32.totalorder 1, %s19
      %p274 = scmp.lt.s32.totalorder %s19, 3
      %p275 = pnand %p273, %p274
      %p276 = pneg %p275
      // Predicated region
      $region9: #{tpu_custom_call.1} parent=5 // pred_check
        _
      $region10: #{tpu_custom_call.1} parent=5 // pred_check_branch
        %278 = sbr.rel (%p275) target = $region12
      $region11: #{tpu_custom_call.1} parent=5 // pred_region
        %s279 = ssub.s32 %s19, 1
        // Predicated region
        $region13: #{tpu_custom_call.1} parent=11 // pred_check
          %p280 = pneg %p92
        $region14: #{tpu_custom_call.1} parent=11 // pred_check_branch
          %282 = sbr.rel (%p280) target = $region16
        $region15: #{tpu_custom_call.1} parent=11 // pred_region
          _
        $region16: #{tpu_custom_call.1} parent=11 // pred_fallthru
          _
        // Predicated region
        $region17: #{tpu_custom_call.1} parent=11 // pred_check
          %p283 = pneg %p113
        $region18: #{tpu_custom_call.1} parent=11 // pred_check_branch
          %285 = sbr.rel (%p283) target = $region20
        $region19: #{tpu_custom_call.1} parent=11 // pred_region
          _
        $region20: #{tpu_custom_call.1} parent=11 // pred_fallthru
          _
        // Predicated region
        $region21: #{tpu_custom_call.1} parent=11 // pred_check
          %p286 = pneg %p134
        $region22: #{tpu_custom_call.1} parent=11 // pred_check_branch
          %288 = sbr.rel (%p286) target = $region24
        $region23: #{tpu_custom_call.1} parent=11 // pred_region
          _
        $region24: #{tpu_custom_call.1} parent=11 // pred_fallthru
          _
        // Predicated region
        $region25: #{tpu_custom_call.1} parent=11 // pred_check
          %p289 = pneg %p155
        $region26: #{tpu_custom_call.1} parent=11 // pred_check_branch
          %291 = sbr.rel (%p289) target = $region28
        $region27: #{tpu_custom_call.1} parent=11 // pred_region
          _
        $region28: #{tpu_custom_call.1} parent=11 // pred_fallthru
          _
        // Predicated region
        $region29: #{tpu_custom_call.1} parent=11 // pred_check
          %p292 = pneg %p176
        $region30: #{tpu_custom_call.1} parent=11 // pred_check_branch
          %294 = sbr.rel (%p292) target = $region32
        $region31: #{tpu_custom_call.1} parent=11 // pred_region
          _
        $region32: #{tpu_custom_call.1} parent=11 // pred_fallthru
          _
        // Predicated region
        $region33: #{tpu_custom_call.1} parent=11 // pred_check
          %p295 = pneg %p197
        $region34: #{tpu_custom_call.1} parent=11 // pred_check_branch
          %297 = sbr.rel (%p295) target = $region36
        $region35: #{tpu_custom_call.1} parent=11 // pred_region
          _
        $region36: #{tpu_custom_call.1} parent=11 // pred_fallthru
          _
        // Predicated region
        $region37: #{tpu_custom_call.1} parent=11 // pred_check
          %p298 = pneg %p218
        $region38: #{tpu_custom_call.1} parent=11 // pred_check_branch
          %300 = sbr.rel (%p298) target = $region40
        $region39: #{tpu_custom_call.1} parent=11 // pred_region
          _
        $region40: #{tpu_custom_call.1} parent=11 // pred_fallthru
          _
        // Predicated region
        $region41: #{tpu_custom_call.1} parent=11 // pred_check
          %p301 = pneg %p239
        $region42: #{tpu_custom_call.1} parent=11 // pred_check_branch
          %303 = sbr.rel (%p301) target = $region44
        $region43: #{tpu_custom_call.1} parent=11 // pred_region
          _
        $region44: #{tpu_custom_call.1} parent=11 // pred_fallthru
          _
      $region12: #{tpu_custom_call.1} parent=5 // pred_fallthru
        _
      %p304 = scmp.lt.s32.totalorder %s19, 2
      // Predicated region
      $region45: #{tpu_custom_call.1} parent=5 // pred_check
        %p305 = pneg %p304
      $region46: #{tpu_custom_call.1} parent=5 // pred_check_branch
        %307 = sbr.rel (%p305) target = $region48
      $region47: #{tpu_custom_call.1} parent=5 // pred_region
        // Predicated region
        $region49: #{tpu_custom_call.1} parent=47 // pred_check
          %p308 = pneg %p39
        $region50: #{tpu_custom_call.1} parent=47 // pred_check_branch
          %310 = sbr.rel (%p308) target = $region52
        $region51: #{tpu_custom_call.1} parent=47 // pred_region
          %p311 = scmp.lt.s32.totalorder %s19, 1
          %s312 = scalar_select %p311, %s19, 1
          %s313 = smul.addr %s312, 8
          %s314 = smul.addr %s313, 8
          %s315 = scalar_lea.vmem %s0, %s314
        $region52: #{tpu_custom_call.1} parent=47 // pred_fallthru
          _
        // Predicated region
        $region53: #{tpu_custom_call.1} parent=47 // pred_check
          %p316 = pneg %p65
        $region54: #{tpu_custom_call.1} parent=47 // pred_check_branch
          %318 = sbr.rel (%p316) target = $region56
        $region55: #{tpu_custom_call.1} parent=47 // pred_region
          %p319 = scmp.lt.s32.totalorder %s19, 1
          %s320 = scalar_select %p319, %s19, 1
          %s321 = smul.addr %s320, 8
          %s322 = smul.addr %s321, 8
          %s323 = scalar_lea.vmem %s1, %s322
        $region56: #{tpu_custom_call.1} parent=47 // pred_fallthru
          _
      $region48: #{tpu_custom_call.1} parent=5 // pred_fallthru
        _
      %p324 = scmp.le.s32.totalorder 1, %s19
      %p325 = scmp.lt.s32.totalorder %s19, 3
      %p326 = pnand %p324, %p325
      %p327 = pneg %p326
      // Predicated region
      $region57: #{tpu_custom_call.1} parent=5 // pred_check
        _
      $region58: #{tpu_custom_call.1} parent=5 // pred_check_branch
        %329 = sbr.rel (%p326) target = $region60
      $region59: #{tpu_custom_call.1} parent=5 // pred_region
        %s330 = ssub.s32 %s19, 1
        %p331 = scmp.lt.s32.totalorder %s24, 1
        %s332 = scalar_select %p331, %s24, 1
        %s333 = smul.addr %s332, 8
        %s334 = smul.addr %s333, 8
        %s335 = scalar_lea.vmem %s0, %s334
        %p336 = pneg %p45
        %p337 = pneg %p42
        %p338 = scmp.lt.s32.totalorder %s24, 1
        %s339 = scalar_select %p338, %s24, 1
        %s340 = smul.addr %s339, 8
        %s341 = smul.addr %s340, 8
        %s342 = scalar_lea.vmem %s1, %s341
        %p343 = pneg %p71
        %p344 = pneg %p68
        %p345 = pneg %p92
        %p346 = pneg %p89
        %p347 = pneg %p113
        %p348 = pneg %p110
        %p349 = pneg %p134
        %p350 = pneg %p131
        %p351 = pneg %p155
        %p352 = pneg %p152
        %p353 = pneg %p176
        %p354 = pneg %p173
        %p355 = pneg %p197
        %p356 = pneg %p194
        %p357 = pneg %p218
        %p358 = pneg %p215
        %p359 = pneg %p239
        %p360 = pneg %p236
        %p361 = pneg %p265
        %p362 = pneg %p262
        %s363 = sand.u32 %s252, 1
        %s364 = scalar_lea.sflag [#allocation3], %s363
        %s365 = sand.u32 %s252, 1
        %s366 = smul.addr %s365, 64
        %s367 = scalar_lea.vmem [#allocation2], %s366
        %p368 = scmp.lt.s32.totalorder %s24, 1
        %s369 = scalar_select %p368, %s24, 1
        %s370 = smul.addr %s369, 8
        %s371 = smul.addr %s370, 8
        %s372 = scalar_lea.vmem %s0, %s371
        %p373 = scmp.lt.s32.totalorder %s24, 1
        %s374 = scalar_select %p373, %s24, 1
        %s375 = smul.addr %s374, 8
        %s376 = smul.addr %s375, 8
        %s377 = scalar_lea.vmem %s1, %s376
        %v379 = vld [vmem:[%s372] sm:$0xff]
        %v380 = vld [vmem:[%s372 + $0x8] sm:$0xff]
        %v381 = vld [vmem:[%s372 + $0x10] sm:$0xff]
        %v382 = vld [vmem:[%s372 + $0x18] sm:$0xff]
        %v383 = vld [vmem:[%s372 + $0x20] sm:$0xff]
        %v384 = vld [vmem:[%s372 + $0x28] sm:$0xff]
        %v385 = vld [vmem:[%s372 + $0x30] sm:$0xff]
        %v386 = vld [vmem:[%s372 + $0x38] sm:$0xff]
        %v387 = vld [vmem:[%s2] sm:$0xff]
        %v388 = vld [vmem:[%s2 + $0x8] sm:$0xff]
        %v389 = vld [vmem:[%s2 + $0x10] sm:$0xff]
        %v390 = vld [vmem:[%s2 + $0x18] sm:$0xff]
        %v391 = vld [vmem:[%s2 + $0x20] sm:$0xff]
        %v392 = vld [vmem:[%s2 + $0x28] sm:$0xff]
        %v393 = vld [vmem:[%s2 + $0x30] sm:$0xff]
        %v394 = vld [vmem:[%s2 + $0x38] sm:$0xff]
        %v395 = vld [vmem:[%s3] sm:$0xff]
        %v396 = vld [vmem:[%s3 + $0x8] sm:$0xff]
        %v397 = vld [vmem:[%s3 + $0x10] sm:$0xff]
        %v398 = vld [vmem:[%s3 + $0x18] sm:$0xff]
        %v399 = vld [vmem:[%s3 + $0x20] sm:$0xff]
        %v400 = vld [vmem:[%s3 + $0x28] sm:$0xff]
        %v401 = vld [vmem:[%s3 + $0x30] sm:$0xff]
        %v402 = vld [vmem:[%s3 + $0x38] sm:$0xff]
        %v403 = vld [vmem:[%s4] sm:$0xff]
        %v404 = vld [vmem:[%s4 + $0x8] sm:$0xff]
        %v405 = vld [vmem:[%s4 + $0x10] sm:$0xff]
        %v406 = vld [vmem:[%s4 + $0x18] sm:$0xff]
        %v407 = vld [vmem:[%s4 + $0x20] sm:$0xff]
        %v408 = vld [vmem:[%s4 + $0x28] sm:$0xff]
        %v409 = vld [vmem:[%s4 + $0x30] sm:$0xff]
        %v410 = vld [vmem:[%s4 + $0x38] sm:$0xff]
        %411 = vadd.xlane.f32.xlu0 %v379
        %v412 = vpop.xlane.xlu0 %411
        %413 = vadd.xlane.f32.xlu0 %v380
        %v414 = vpop.xlane.xlu0 %413
        %415 = vadd.xlane.f32.xlu0 %v381
        %v416 = vpop.xlane.xlu0 %415
        %417 = vadd.xlane.f32.xlu0 %v382
        %v418 = vpop.xlane.xlu0 %417
        %419 = vadd.xlane.f32.xlu0 %v383
        %v420 = vpop.xlane.xlu0 %419
        %421 = vadd.xlane.f32.xlu0 %v384
        %v422 = vpop.xlane.xlu0 %421
        %423 = vadd.xlane.f32.xlu0 %v385
        %v424 = vpop.xlane.xlu0 %423
        %425 = vadd.xlane.f32.xlu0 %v386
        %v426 = vpop.xlane.xlu0 %425
        %v427 = vmul.f32 %v379, %v379
        %v428 = vmul.f32 %v380, %v380
        %v429 = vmul.f32 %v381, %v381
        %v430 = vmul.f32 %v382, %v382
        %v431 = vmul.f32 %v383, %v383
        %v432 = vmul.f32 %v384, %v384
        %v433 = vmul.f32 %v385, %v385
        %v434 = vmul.f32 %v386, %v386
        %435 = vadd.xlane.f32.xlu0 %v427
        %v436 = vpop.xlane.xlu0 %435
        %437 = vadd.xlane.f32.xlu0 %v428
        %v438 = vpop.xlane.xlu0 %437
        %439 = vadd.xlane.f32.xlu0 %v429
        %v440 = vpop.xlane.xlu0 %439
        %441 = vadd.xlane.f32.xlu0 %v430
        %v442 = vpop.xlane.xlu0 %441
        %443 = vadd.xlane.f32.xlu0 %v431
        %v444 = vpop.xlane.xlu0 %443
        %445 = vadd.xlane.f32.xlu0 %v432
        %v446 = vpop.xlane.xlu0 %445
        %447 = vadd.xlane.f32.xlu0 %v433
        %v448 = vpop.xlane.xlu0 %447
        %449 = vadd.xlane.f32.xlu0 %v434
        %v450 = vpop.xlane.xlu0 %449
        %vm451 = vcmask 7168
        %v452 = vsel %vm451, %v412, %v436
        %v453 = vsel %vm451, %v414, %v438
        %v454 = vsel %vm451, %v416, %v440
        %v455 = vsel %vm451, %v418, %v442
        %v456 = vsel %vm451, %v420, %v444
        %v457 = vsel %vm451, %v422, %v446
        %v458 = vsel %vm451, %v424, %v448
        %v459 = vsel %vm451, %v426, %v450
        %v460 = vmul.f32 %v452, 0.0078125
        %v461 = vmul.f32 %v453, 0.0078125
        %v462 = vmul.f32 %v454, 0.0078125
        %v463 = vmul.f32 %v455, 0.0078125
        %v464 = vmul.f32 %v456, 0.0078125
        %v465 = vmul.f32 %v457, 0.0078125
        %v466 = vmul.f32 %v458, 0.0078125
        %v467 = vmul.f32 %v459, 0.0078125
        %vm468 = vcmask 523264
        %v470 = vsel %vm468, %v387, 0
        %v473 = vsel %vm468, %v388, 0
        %v476 = vsel %vm468, %v389, 0
        %v479 = vsel %vm468, %v390, 0
        %v482 = vsel %vm468, %v391, 0
        %v485 = vsel %vm468, %v392, 0
        %v488 = vsel %vm468, %v393, 0
        %v491 = vsel %vm468, %v394, 0
        %493 = vmatprep.subr.mxu0 0.0
        %494 = vmatpush1.msra.mxu0 0.0
        %495 = vmatprep.subr.mxu0 0.0
        %496 = vmatpush1.msra.mxu0 0.0
        %497 = vmatprep.subr.mxu0 0.0
        %498 = vmatpush1.msra.mxu0 0.0
        %499 = vmatprep.subr.mxu0 0.0
        %500 = vmatpush1.msra.mxu0 0.0
        %501 = vmatprep.subr.mxu0 0.0
        %502 = vmatpush1.msra.mxu0 0.0
        %503 = vmatprep.subr.mxu0 0.0
        %504 = vmatpush1.msra.mxu0 0.0
        %505 = vmatprep.subr.mxu0 0.0
        %506 = vmatpush1.msra.mxu0 0.0
        %507 = vmatprep.subr.mxu0 0.0
        %508 = vmatpush1.msra.mxu0 0.0
        %509 = vmatprep.subr.mxu0 0.0
        %510 = vmatpush1.msra.mxu0 %v467
        %511 = vmatprep.subr.mxu0 0.0
        %512 = vmatpush1.msra.mxu0 %v466
        %513 = vmatprep.subr.mxu0 0.0
        %514 = vmatpush1.msra.mxu0 %v465
        %515 = vmatprep.subr.mxu0 0.0
        %516 = vmatpush1.msra.mxu0 %v464
        %517 = vmatprep.subr.mxu0 0.0
        %518 = vmatpush1.msra.mxu0 %v463
        %519 = vmatprep.subr.mxu0 0.0
        %520 = vmatpush1.msra.mxu0 %v462
        %521 = vmatprep.subr.mxu0 0.0
        %522 = vmatpush1.msra.mxu0 %v461
        %523 = vmatprep.subr.mxu0 0.0
        %524 = vmatpush1.msra.mxu0 %v460
        %525 = vmatprep.subr.mxu0 0.0
        %526 = vmatpush2.msra.mxu0 0.0
        %527 = vmatprep.subr.mxu0 0.0
        %528 = vmatpush2.msra.mxu0 0.0
        %529 = vmatprep.subr.mxu0 0.0
        %530 = vmatpush2.msra.mxu0 0.0
        %531 = vmatprep.subr.mxu0 0.0
        %532 = vmatpush2.msra.mxu0 0.0
        %533 = vmatprep.subr.mxu0 0.0
        %534 = vmatpush2.msra.mxu0 0.0
        %535 = vmatprep.subr.mxu0 0.0
        %536 = vmatpush2.msra.mxu0 0.0
        %537 = vmatprep.subr.mxu0 0.0
        %538 = vmatpush2.msra.mxu0 0.0
        %539 = vmatprep.subr.mxu0 0.0
        %540 = vmatpush2.msra.mxu0 0.0
        %541 = vmatprep.subr.mxu0 0.0
        %542 = vmatpush2.msra.mxu0 0.0
        %543 = vmatprep.subr.mxu0 0.0
        %544 = vmatpush2.msra.mxu0 0.0
        %545 = vmatprep.subr.mxu0 0.0
        %546 = vmatpush2.msra.mxu0 0.0
        %547 = vmatprep.subr.mxu0 0.0
        %548 = vmatpush2.msra.mxu0 0.0
        %549 = vmatprep.subr.mxu0 0.0
        %550 = vmatpush2.msra.mxu0 0.0
        %551 = vmatprep.subr.mxu0 0.0
        %552 = vmatpush2.msra.mxu0 0.0
        %553 = vmatprep.subr.mxu0 0.0
        %554 = vmatpush2.msra.mxu0 0.0
        %555 = vmatprep.subr.mxu0 0.0
        %556 = vmatpush2.msra.mxu0 0.0
        %557 = vmatprep.mubr.f32.mxu0 0.0
        %558 = vmatmul.mubr.f32.gmra.mxu0 %v470
        %v559 = vpop.f32.mrf.mxu0
        %v560 = vadd.f32 0.0, %v559
        %v561 = vpop.f32.mrf.mxu0
        %562 = vmatprep.mubr.f32.mxu0 0.0
        %563 = vmatmul.mubr.f32.gmra.mxu0 %v473
        %v564 = vpop.f32.mrf.mxu0
        %v565 = vadd.f32 0.0, %v564
        %v566 = vpop.f32.mrf.mxu0
        %567 = vmatprep.mubr.f32.mxu0 0.0
        %568 = vmatmul.mubr.f32.gmra.mxu0 %v476
        %v569 = vpop.f32.mrf.mxu0
        %v570 = vadd.f32 0.0, %v569
        %v571 = vpop.f32.mrf.mxu0
        %572 = vmatprep.mubr.f32.mxu0 0.0
        %573 = vmatmul.mubr.f32.gmra.mxu0 %v479
        %v574 = vpop.f32.mrf.mxu0
        %v575 = vadd.f32 0.0, %v574
        %v576 = vpop.f32.mrf.mxu0
        %577 = vmatprep.mubr.f32.mxu0 0.0
        %578 = vmatmul.mubr.f32.gmra.mxu0 %v482
        %v579 = vpop.f32.mrf.mxu0
        %v580 = vadd.f32 0.0, %v579
        %v581 = vpop.f32.mrf.mxu0
        %582 = vmatprep.mubr.f32.mxu0 0.0
        %583 = vmatmul.mubr.f32.gmra.mxu0 %v485
        %v584 = vpop.f32.mrf.mxu0
        %v585 = vadd.f32 0.0, %v584
        %v586 = vpop.f32.mrf.mxu0
        %587 = vmatprep.mubr.f32.mxu0 0.0
        %588 = vmatmul.mubr.f32.gmra.mxu0 %v488
        %v589 = vpop.f32.mrf.mxu0
        %v590 = vadd.f32 0.0, %v589
        %v591 = vpop.f32.mrf.mxu0
        %592 = vmatprep.mubr.f32.mxu0 0.0
        %593 = vmatmul.mubr.f32.gmra.mxu0 %v491
        %v594 = vpop.f32.mrf.mxu0
        %v595 = vadd.f32 0.0, %v594
        %v596 = vpop.f32.mrf.mxu0
        %597 = vdwg.mxu0
        %v598 = vmul.f32 %v560, %v560
        %v599 = vmul.f32 %v565, %v565
        %v600 = vmul.f32 %v570, %v570
        %v601 = vmul.f32 %v575, %v575
        %v602 = vmul.f32 %v580, %v580
        %v603 = vmul.f32 %v585, %v585
        %v604 = vmul.f32 %v590, %v590
        %v605 = vmul.f32 %v595, %v595
        %614 = vrot.lane.b32.xlu0 %v598, 1
        %v615 = vpop.permute.xlu0 %614
        %616 = vrot.lane.b32.xlu0 %v599, 1
        %v617 = vpop.permute.xlu0 %616
        %618 = vrot.lane.b32.xlu0 %v600, 1
        %v619 = vpop.permute.xlu0 %618
        %620 = vrot.lane.b32.xlu0 %v601, 1
        %v621 = vpop.permute.xlu0 %620
        %622 = vrot.lane.b32.xlu0 %v602, 1
        %v623 = vpop.permute.xlu0 %622
        %624 = vrot.lane.b32.xlu0 %v603, 1
        %v625 = vpop.permute.xlu0 %624
        %626 = vrot.lane.b32.xlu0 %v604, 1
        %v627 = vpop.permute.xlu0 %626
        %628 = vrot.lane.b32.xlu0 %v605, 1
        %v629 = vpop.permute.xlu0 %628
        %v638 = vsub.f32 %v560, %v615
        %v639 = vsub.f32 %v565, %v617
        %v640 = vsub.f32 %v570, %v619
        %v641 = vsub.f32 %v575, %v621
        %v642 = vsub.f32 %v580, %v623
        %v643 = vsub.f32 %v585, %v625
        %v644 = vsub.f32 %v590, %v627
        %v645 = vsub.f32 %v595, %v629
        %v646 = vmax.f32 %v638, 0.0
        %v647 = vmax.f32 %v639, 0.0
        %v648 = vmax.f32 %v640, 0.0
        %v649 = vmax.f32 %v641, 0.0
        %v650 = vmax.f32 %v642, 0.0
        %v651 = vmax.f32 %v643, 0.0
        %v652 = vmax.f32 %v644, 0.0
        %v653 = vmax.f32 %v645, 0.0
        %v654 = vadd.f32 %v646, 1e-05
        %v655 = vadd.f32 %v647, 1e-05
        %v656 = vadd.f32 %v648, 1e-05
        %v657 = vadd.f32 %v649, 1e-05
        %v658 = vadd.f32 %v650, 1e-05
        %v659 = vadd.f32 %v651, 1e-05
        %v660 = vadd.f32 %v652, 1e-05
        %v661 = vadd.f32 %v653, 1e-05
        %v662 = vrsqrt.pop %v654
        %v663 = vrsqrt.pop %v655
        %v664 = vrsqrt.pop %v656
        %v665 = vrsqrt.pop %v657
        %v666 = vrsqrt.pop %v658
        %v667 = vrsqrt.pop %v659
        %v668 = vrsqrt.pop %v660
        %v669 = vrsqrt.pop %v661
        %678 = vrot.lane.b32.xlu0 %v395, 1
        %v679 = vpop.permute.xlu0 %678
        %680 = vrot.lane.b32.xlu0 %v396, 1
        %v681 = vpop.permute.xlu0 %680
        %682 = vrot.lane.b32.xlu0 %v397, 1
        %v683 = vpop.permute.xlu0 %682
        %684 = vrot.lane.b32.xlu0 %v398, 1
        %v685 = vpop.permute.xlu0 %684
        %686 = vrot.lane.b32.xlu0 %v399, 1
        %v687 = vpop.permute.xlu0 %686
        %688 = vrot.lane.b32.xlu0 %v400, 1
        %v689 = vpop.permute.xlu0 %688
        %690 = vrot.lane.b32.xlu0 %v401, 1
        %v691 = vpop.permute.xlu0 %690
        %692 = vrot.lane.b32.xlu0 %v402, 1
        %v693 = vpop.permute.xlu0 %692
        %v702 = vmul.f32 %v662, %v679
        %v703 = vmul.f32 %v663, %v681
        %v704 = vmul.f32 %v664, %v683
        %v705 = vmul.f32 %v665, %v685
        %v706 = vmul.f32 %v666, %v687
        %v707 = vmul.f32 %v667, %v689
        %v708 = vmul.f32 %v668, %v691
        %v709 = vmul.f32 %v669, %v693
        %718 = vrot.lane.b32.xlu0 %v702, 127
        %v719 = vpop.permute.xlu0 %718
        %720 = vrot.lane.b32.xlu0 %v703, 127
        %v721 = vpop.permute.xlu0 %720
        %722 = vrot.lane.b32.xlu0 %v704, 127
        %v723 = vpop.permute.xlu0 %722
        %724 = vrot.lane.b32.xlu0 %v705, 127
        %v725 = vpop.permute.xlu0 %724
        %726 = vrot.lane.b32.xlu0 %v706, 127
        %v727 = vpop.permute.xlu0 %726
        %728 = vrot.lane.b32.xlu0 %v707, 127
        %v729 = vpop.permute.xlu0 %728
        %730 = vrot.lane.b32.xlu0 %v708, 127
        %v731 = vpop.permute.xlu0 %730
        %732 = vrot.lane.b32.xlu0 %v709, 127
        %v733 = vpop.permute.xlu0 %732
        %v742 = vmul.f32 %v560, %v719
        %v743 = vmul.f32 %v565, %v721
        %v744 = vmul.f32 %v570, %v723
        %v745 = vmul.f32 %v575, %v725
        %v746 = vmul.f32 %v580, %v727
        %v747 = vmul.f32 %v585, %v729
        %v748 = vmul.f32 %v590, %v731
        %v749 = vmul.f32 %v595, %v733
        %v750 = vsub.f32 %v403, %v742
        %v751 = vsub.f32 %v404, %v743
        %v752 = vsub.f32 %v405, %v744
        %v753 = vsub.f32 %v406, %v745
        %v754 = vsub.f32 %v407, %v746
        %v755 = vsub.f32 %v408, %v747
        %v756 = vsub.f32 %v409, %v748
        %v757 = vsub.f32 %v410, %v749
        %758 = vset.pattern.permute.xlu0 1
        %759 = vperm.xlu0 %758, %v702
        %v760 = vpop.permute.xlu0 %759
        %762 = vset.pattern.permute.xlu0 1
        %763 = vperm.xlu0 %762, %v703
        %v764 = vpop.permute.xlu0 %763
        %766 = vset.pattern.permute.xlu0 1
        %767 = vperm.xlu0 %766, %v704
        %v768 = vpop.permute.xlu0 %767
        %770 = vset.pattern.permute.xlu0 1
        %771 = vperm.xlu0 %770, %v705
        %v772 = vpop.permute.xlu0 %771
        %774 = vset.pattern.permute.xlu0 1
        %775 = vperm.xlu0 %774, %v706
        %v776 = vpop.permute.xlu0 %775
        %778 = vset.pattern.permute.xlu0 1
        %779 = vperm.xlu0 %778, %v707
        %v780 = vpop.permute.xlu0 %779
        %782 = vset.pattern.permute.xlu0 1
        %783 = vperm.xlu0 %782, %v708
        %v784 = vpop.permute.xlu0 %783
        %786 = vset.pattern.permute.xlu0 1
        %787 = vperm.xlu0 %786, %v709
        %v788 = vpop.permute.xlu0 %787
        %v790 = vmul.f32 %v379, %v760
        %v791 = vmul.f32 %v380, %v764
        %v792 = vmul.f32 %v381, %v768
        %v793 = vmul.f32 %v382, %v772
        %v794 = vmul.f32 %v383, %v776
        %v795 = vmul.f32 %v384, %v780
        %v796 = vmul.f32 %v385, %v784
        %v797 = vmul.f32 %v386, %v788
        %799 = vset.pattern.permute.xlu0 0
        %800 = vperm.xlu0 %799, %v750
        %v801 = vpop.permute.xlu0 %800
        %804 = vset.pattern.permute.xlu0 0
        %805 = vperm.xlu0 %804, %v751
        %v806 = vpop.permute.xlu0 %805
        %809 = vset.pattern.permute.xlu0 0
        %810 = vperm.xlu0 %809, %v752
        %v811 = vpop.permute.xlu0 %810
        %814 = vset.pattern.permute.xlu0 0
        %815 = vperm.xlu0 %814, %v753
        %v816 = vpop.permute.xlu0 %815
        %819 = vset.pattern.permute.xlu0 0
        %820 = vperm.xlu0 %819, %v754
        %v821 = vpop.permute.xlu0 %820
        %824 = vset.pattern.permute.xlu0 0
        %825 = vperm.xlu0 %824, %v755
        %v826 = vpop.permute.xlu0 %825
        %829 = vset.pattern.permute.xlu0 0
        %830 = vperm.xlu0 %829, %v756
        %v831 = vpop.permute.xlu0 %830
        %834 = vset.pattern.permute.xlu0 0
        %835 = vperm.xlu0 %834, %v757
        %v836 = vpop.permute.xlu0 %835
        %v838 = vadd.f32 %v790, %v801
        %v839 = vadd.f32 %v791, %v806
        %v840 = vadd.f32 %v792, %v811
        %v841 = vadd.f32 %v793, %v816
        %v842 = vadd.f32 %v794, %v821
        %v843 = vadd.f32 %v795, %v826
        %v844 = vadd.f32 %v796, %v831
        %v845 = vadd.f32 %v797, %v836
        %v846 = vxor.u32 %v838, 2147483648
        %v847 = vxor.u32 %v839, 2147483648
        %v848 = vxor.u32 %v840, 2147483648
        %v849 = vxor.u32 %v841, 2147483648
        %v850 = vxor.u32 %v842, 2147483648
        %v851 = vxor.u32 %v843, 2147483648
        %v852 = vxor.u32 %v844, 2147483648
        %v853 = vxor.u32 %v845, 2147483648
        %v854 = vmul.f32 %v846, 1.442695
        %v855 = vpow.pop %v854
        %v856 = vmul.f32 %v847, 1.442695
        %v857 = vpow.pop %v856
        %v858 = vmul.f32 %v848, 1.442695
        %v859 = vpow.pop %v858
        %v860 = vmul.f32 %v849, 1.442695
        %v861 = vpow.pop %v860
        %v862 = vmul.f32 %v850, 1.442695
        %v863 = vpow.pop %v862
        %v864 = vmul.f32 %v851, 1.442695
        %v865 = vpow.pop %v864
        %v866 = vmul.f32 %v852, 1.442695
        %v867 = vpow.pop %v866
        %v868 = vmul.f32 %v853, 1.442695
        %v869 = vpow.pop %v868
        %v870 = vadd.f32 %v855, 1.0
        %v871 = vadd.f32 %v857, 1.0
        %v872 = vadd.f32 %v859, 1.0
        %v873 = vadd.f32 %v861, 1.0
        %v874 = vadd.f32 %v863, 1.0
        %v875 = vadd.f32 %v865, 1.0
        %v876 = vadd.f32 %v867, 1.0
        %v877 = vadd.f32 %v869, 1.0
        %v878 = vrcp.pop %v870
        %v879 = vmul.f32 1.0, %v878
        %v880 = vrcp.pop %v871
        %v881 = vmul.f32 1.0, %v880
        %v882 = vrcp.pop %v872
        %v883 = vmul.f32 1.0, %v882
        %v884 = vrcp.pop %v873
        %v885 = vmul.f32 1.0, %v884
        %v886 = vrcp.pop %v874
        %v887 = vmul.f32 1.0, %v886
        %v888 = vrcp.pop %v875
        %v889 = vmul.f32 1.0, %v888
        %v890 = vrcp.pop %v876
        %v891 = vmul.f32 1.0, %v890
        %v892 = vrcp.pop %v877
        %v893 = vmul.f32 1.0, %v892
        %v894 = vmul.f32 %v838, %v879
        %v895 = vmul.f32 %v839, %v881
        %v896 = vmul.f32 %v840, %v883
        %v897 = vmul.f32 %v841, %v885
        %v898 = vmul.f32 %v842, %v887
        %v899 = vmul.f32 %v843, %v889
        %v900 = vmul.f32 %v844, %v891
        %v901 = vmul.f32 %v845, %v893
        %v902 = vld [vmem:[%s5] sm:$0xf]
        %v903 = vld [vmem:[%s5 + $0x4] sm:$0xf]
        %v904 = vld [vmem:[%s5 + $0x8] sm:$0xf]
        %v905 = vld [vmem:[%s5 + $0xc] sm:$0xf]
        %v906 = vld [vmem:[%s5 + $0x10] sm:$0xf]
        %v907 = vld [vmem:[%s5 + $0x14] sm:$0xf]
        %v908 = vld [vmem:[%s5 + $0x18] sm:$0xf]
        %v909 = vld [vmem:[%s5 + $0x1c] sm:$0xf]
        %v910 = vpack.c.bf16 %v895, %v894
        %v911 = vpack.c.bf16 %v897, %v896
        %v912 = vpack.c.bf16 %v899, %v898
        %v913 = vpack.c.bf16 %v901, %v900
        %v914 = vld [vmem:[%s377] sm:$0xff]
        %v915 = vld [vmem:[%s377 + $0x8] sm:$0xff]
        %v916 = vld [vmem:[%s377 + $0x10] sm:$0xff]
        %v917 = vld [vmem:[%s377 + $0x18] sm:$0xff]
        %v918 = vld [vmem:[%s377 + $0x20] sm:$0xff]
        %v919 = vld [vmem:[%s377 + $0x28] sm:$0xff]
        %v920 = vld [vmem:[%s377 + $0x30] sm:$0xff]
        %v921 = vld [vmem:[%s377 + $0x38] sm:$0xff]
        %923 = vset.pattern.permute.xlu0 0
        %924 = vperm.xlu0 %923, %v914
        %v925 = vpop.permute.xlu0 %924
        %928 = vset.pattern.permute.xlu0 0
        %929 = vperm.xlu0 %928, %v915
        %v930 = vpop.permute.xlu0 %929
        %933 = vset.pattern.permute.xlu0 0
        %934 = vperm.xlu0 %933, %v916
        %v935 = vpop.permute.xlu0 %934
        %938 = vset.pattern.permute.xlu0 0
        %939 = vperm.xlu0 %938, %v917
        %v940 = vpop.permute.xlu0 %939
        %943 = vset.pattern.permute.xlu0 0
        %944 = vperm.xlu0 %943, %v918
        %v945 = vpop.permute.xlu0 %944
        %948 = vset.pattern.permute.xlu0 0
        %949 = vperm.xlu0 %948, %v919
        %v950 = vpop.permute.xlu0 %949
        %953 = vset.pattern.permute.xlu0 0
        %954 = vperm.xlu0 %953, %v920
        %v955 = vpop.permute.xlu0 %954
        %958 = vset.pattern.permute.xlu0 0
        %959 = vperm.xlu0 %958, %v921
        %v960 = vpop.permute.xlu0 %959
        %v970 = vunpack.c.l.b16 %v902
        %v971 = vunpack.c.l.b16 %v903
        %v972 = vunpack.c.l.b16 %v904
        %v973 = vunpack.c.l.b16 %v905
        %v974 = vunpack.c.l.b16 %v906
        %v975 = vunpack.c.l.b16 %v907
        %v976 = vunpack.c.l.b16 %v908
        %v977 = vunpack.c.l.b16 %v909
        %v978 = vpack.c.b16 %v971, %v970
        %v979 = vpack.c.b16 %v973, %v972
        %v980 = vpack.c.b16 %v975, %v974
        %v981 = vpack.c.b16 %v977, %v976
        %v983 = vsel %vm468, %v978, 0
        %v986 = vsel %vm468, %v979, 0
        %v989 = vsel %vm468, %v980, 0
        %v992 = vsel %vm468, %v981, 0
        %994 = vmatprep.subr.bf16.mxu0 0
        %995 = vmatpush1.bf16.msra.mxu0 0
        %996 = vmatprep.subr.bf16.mxu0 0
        %997 = vmatpush1.bf16.msra.mxu0 0
        %998 = vmatprep.subr.bf16.mxu0 0
        %999 = vmatpush1.bf16.msra.mxu0 0
        %1000 = vmatprep.subr.bf16.mxu0 0
        %1001 = vmatpush1.bf16.msra.mxu0 0
        %1002 = vmatprep.subr.bf16.mxu0 0
        %1003 = vmatpush1.bf16.msra.mxu0 %v913
        %1004 = vmatprep.subr.bf16.mxu0 0
        %1005 = vmatpush1.bf16.msra.mxu0 %v912
        %1006 = vmatprep.subr.bf16.mxu0 0
        %1007 = vmatpush1.bf16.msra.mxu0 %v911
        %1008 = vmatprep.subr.bf16.mxu0 0
        %1009 = vmatpush1.bf16.msra.mxu0 %v910
        %1010 = vmatprep.subr.bf16.mxu0 0
        %1011 = vmatpush2.bf16.msra.mxu0 0
        %1012 = vmatprep.subr.bf16.mxu0 0
        %1013 = vmatpush2.bf16.msra.mxu0 0
        %1014 = vmatprep.subr.bf16.mxu0 0
        %1015 = vmatpush2.bf16.msra.mxu0 0
        %1016 = vmatprep.subr.bf16.mxu0 0
        %1017 = vmatpush2.bf16.msra.mxu0 0
        %1018 = vmatprep.subr.bf16.mxu0 0
        %1019 = vmatpush2.bf16.msra.mxu0 0
        %1020 = vmatprep.subr.bf16.mxu0 0
        %1021 = vmatpush2.bf16.msra.mxu0 0
        %1022 = vmatprep.subr.bf16.mxu0 0
        %1023 = vmatpush2.bf16.msra.mxu0 0
        %1024 = vmatprep.subr.bf16.mxu0 0
        %1025 = vmatpush2.bf16.msra.mxu0 0
        %1026 = vmatprep.mubr.bf16.mxu0 0
        %1027 = vmatmul.mubr.bf16.gmra.mxu0 %v983
        %v1028 = vpop.f32.mrf.mxu0
        %v1029 = vadd.f32 %v925, %v1028
        %v1030 = vpop.f32.mrf.mxu0
        %v1031 = vpop.f32.mrf.mxu0
        %v1032 = vadd.f32 %v930, %v1031
        %v1033 = vpop.f32.mrf.mxu0
        %1034 = vmatprep.mubr.bf16.mxu0 0
        %1035 = vmatmul.mubr.bf16.gmra.mxu0 %v986
        %v1036 = vpop.f32.mrf.mxu0
        %v1037 = vadd.f32 %v935, %v1036
        %v1038 = vpop.f32.mrf.mxu0
        %v1039 = vpop.f32.mrf.mxu0
        %v1040 = vadd.f32 %v940, %v1039
        %v1041 = vpop.f32.mrf.mxu0
        %1042 = vmatprep.mubr.bf16.mxu0 0
        %1043 = vmatmul.mubr.bf16.gmra.mxu0 %v989
        %v1044 = vpop.f32.mrf.mxu0
        %v1045 = vadd.f32 %v945, %v1044
        %v1046 = vpop.f32.mrf.mxu0
        %v1047 = vpop.f32.mrf.mxu0
        %v1048 = vadd.f32 %v950, %v1047
        %v1049 = vpop.f32.mrf.mxu0
        %1050 = vmatprep.mubr.bf16.mxu0 0
        %1051 = vmatmul.mubr.bf16.gmra.mxu0 %v992
        %v1052 = vpop.f32.mrf.mxu0
        %v1053 = vadd.f32 %v955, %v1052
        %v1054 = vpop.f32.mrf.mxu0
        %v1055 = vpop.f32.mrf.mxu0
        %v1056 = vadd.f32 %v960, %v1055
        %v1057 = vpop.f32.mrf.mxu0
        %1058 = vdwg.mxu0
        %v1059 = vld [vmem:[%s6] sm:$0xff]
        %v1060 = vld [vmem:[%s6 + $0x8] sm:$0xff]
        %v1061 = vld [vmem:[%s6 + $0x10] sm:$0xff]
        %v1062 = vld [vmem:[%s6 + $0x18] sm:$0xff]
        %v1063 = vld [vmem:[%s6 + $0x20] sm:$0xff]
        %v1064 = vld [vmem:[%s6 + $0x28] sm:$0xff]
        %v1065 = vld [vmem:[%s6 + $0x30] sm:$0xff]
        %v1066 = vld [vmem:[%s6 + $0x38] sm:$0xff]
        %v1067 = vld [vmem:[%s7] sm:$0xff]
        %v1068 = vld [vmem:[%s7 + $0x8] sm:$0xff]
        %v1069 = vld [vmem:[%s7 + $0x10] sm:$0xff]
        %v1070 = vld [vmem:[%s7 + $0x18] sm:$0xff]
        %v1071 = vld [vmem:[%s7 + $0x20] sm:$0xff]
        %v1072 = vld [vmem:[%s7 + $0x28] sm:$0xff]
        %v1073 = vld [vmem:[%s7 + $0x30] sm:$0xff]
        %v1074 = vld [vmem:[%s7 + $0x38] sm:$0xff]
        %1075 = vadd.xlane.f32.xlu0 %v1029
        %v1076 = vpop.xlane.xlu0 %1075
        %1077 = vadd.xlane.f32.xlu0 %v1032
        %v1078 = vpop.xlane.xlu0 %1077
        %1079 = vadd.xlane.f32.xlu0 %v1037
        %v1080 = vpop.xlane.xlu0 %1079
        %1081 = vadd.xlane.f32.xlu0 %v1040
        %v1082 = vpop.xlane.xlu0 %1081
        %1083 = vadd.xlane.f32.xlu0 %v1045
        %v1084 = vpop.xlane.xlu0 %1083
        %1085 = vadd.xlane.f32.xlu0 %v1048
        %v1086 = vpop.xlane.xlu0 %1085
        %1087 = vadd.xlane.f32.xlu0 %v1053
        %v1088 = vpop.xlane.xlu0 %1087
        %1089 = vadd.xlane.f32.xlu0 %v1056
        %v1090 = vpop.xlane.xlu0 %1089
        %v1091 = vmul.f32 %v1029, %v1029
        %v1092 = vmul.f32 %v1032, %v1032
        %v1093 = vmul.f32 %v1037, %v1037
        %v1094 = vmul.f32 %v1040, %v1040
        %v1095 = vmul.f32 %v1045, %v1045
        %v1096 = vmul.f32 %v1048, %v1048
        %v1097 = vmul.f32 %v1053, %v1053
        %v1098 = vmul.f32 %v1056, %v1056
        %1099 = vadd.xlane.f32.xlu0 %v1091
        %v1100 = vpop.xlane.xlu0 %1099
        %1101 = vadd.xlane.f32.xlu0 %v1092
        %v1102 = vpop.xlane.xlu0 %1101
        %1103 = vadd.xlane.f32.xlu0 %v1093
        %v1104 = vpop.xlane.xlu0 %1103
        %1105 = vadd.xlane.f32.xlu0 %v1094
        %v1106 = vpop.xlane.xlu0 %1105
        %1107 = vadd.xlane.f32.xlu0 %v1095
        %v1108 = vpop.xlane.xlu0 %1107
        %1109 = vadd.xlane.f32.xlu0 %v1096
        %v1110 = vpop.xlane.xlu0 %1109
        %1111 = vadd.xlane.f32.xlu0 %v1097
        %v1112 = vpop.xlane.xlu0 %1111
        %1113 = vadd.xlane.f32.xlu0 %v1098
        %v1114 = vpop.xlane.xlu0 %1113
        %v1115 = vsel %vm451, %v1076, %v1100
        %v1116 = vsel %vm451, %v1078, %v1102
        %v1117 = vsel %vm451, %v1080, %v1104
        %v1118 = vsel %vm451, %v1082, %v1106
        %v1119 = vsel %vm451, %v1084, %v1108
        %v1120 = vsel %vm451, %v1086, %v1110
        %v1121 = vsel %vm451, %v1088, %v1112
        %v1122 = vsel %vm451, %v1090, %v1114
        %v1123 = vmul.f32 %v1115, 0.0078125
        %v1124 = vmul.f32 %v1116, 0.0078125
        %v1125 = vmul.f32 %v1117, 0.0078125
        %v1126 = vmul.f32 %v1118, 0.0078125
        %v1127 = vmul.f32 %v1119, 0.0078125
        %v1128 = vmul.f32 %v1120, 0.0078125
        %v1129 = vmul.f32 %v1121, 0.0078125
        %v1130 = vmul.f32 %v1122, 0.0078125
        %1131 = vmatprep.subr.mxu0 0.0
        %1132 = vmatpush1.msra.mxu0 0.0
        %1133 = vmatprep.subr.mxu0 0.0
        %1134 = vmatpush1.msra.mxu0 0.0
        %1135 = vmatprep.subr.mxu0 0.0
        %1136 = vmatpush1.msra.mxu0 0.0
        %1137 = vmatprep.subr.mxu0 0.0
        %1138 = vmatpush1.msra.mxu0 0.0
        %1139 = vmatprep.subr.mxu0 0.0
        %1140 = vmatpush1.msra.mxu0 0.0
        %1141 = vmatprep.subr.mxu0 0.0
        %1142 = vmatpush1.msra.mxu0 0.0
        %1143 = vmatprep.subr.mxu0 0.0
        %1144 = vmatpush1.msra.mxu0 0.0
        %1145 = vmatprep.subr.mxu0 0.0
        %1146 = vmatpush1.msra.mxu0 0.0
        %1147 = vmatprep.subr.mxu0 0.0
        %1148 = vmatpush1.msra.mxu0 %v1130
        %1149 = vmatprep.subr.mxu0 0.0
        %1150 = vmatpush1.msra.mxu0 %v1129
        %1151 = vmatprep.subr.mxu0 0.0
        %1152 = vmatpush1.msra.mxu0 %v1128
        %1153 = vmatprep.subr.mxu0 0.0
        %1154 = vmatpush1.msra.mxu0 %v1127
        %1155 = vmatprep.subr.mxu0 0.0
        %1156 = vmatpush1.msra.mxu0 %v1126
        %1157 = vmatprep.subr.mxu0 0.0
        %1158 = vmatpush1.msra.mxu0 %v1125
        %1159 = vmatprep.subr.mxu0 0.0
        %1160 = vmatpush1.msra.mxu0 %v1124
        %1161 = vmatprep.subr.mxu0 0.0
        %1162 = vmatpush1.msra.mxu0 %v1123
        %1163 = vmatprep.subr.mxu0 0.0
        %1164 = vmatpush2.msra.mxu0 0.0
        %1165 = vmatprep.subr.mxu0 0.0
        %1166 = vmatpush2.msra.mxu0 0.0
        %1167 = vmatprep.subr.mxu0 0.0
        %1168 = vmatpush2.msra.mxu0 0.0
        %1169 = vmatprep.subr.mxu0 0.0
        %1170 = vmatpush2.msra.mxu0 0.0
        %1171 = vmatprep.subr.mxu0 0.0
        %1172 = vmatpush2.msra.mxu0 0.0
        %1173 = vmatprep.subr.mxu0 0.0
        %1174 = vmatpush2.msra.mxu0 0.0
        %1175 = vmatprep.subr.mxu0 0.0
        %1176 = vmatpush2.msra.mxu0 0.0
        %1177 = vmatprep.subr.mxu0 0.0
        %1178 = vmatpush2.msra.mxu0 0.0
        %1179 = vmatprep.subr.mxu0 0.0
        %1180 = vmatpush2.msra.mxu0 0.0
        %1181 = vmatprep.subr.mxu0 0.0
        %1182 = vmatpush2.msra.mxu0 0.0
        %1183 = vmatprep.subr.mxu0 0.0
        %1184 = vmatpush2.msra.mxu0 0.0
        %1185 = vmatprep.subr.mxu0 0.0
        %1186 = vmatpush2.msra.mxu0 0.0
        %1187 = vmatprep.subr.mxu0 0.0
        %1188 = vmatpush2.msra.mxu0 0.0
        %1189 = vmatprep.subr.mxu0 0.0
        %1190 = vmatpush2.msra.mxu0 0.0
        %1191 = vmatprep.subr.mxu0 0.0
        %1192 = vmatpush2.msra.mxu0 0.0
        %1193 = vmatprep.subr.mxu0 0.0
        %1194 = vmatpush2.msra.mxu0 0.0
        %1195 = vmatprep.mubr.f32.mxu0 0.0
        %1196 = vmatmul.mubr.f32.gmra.mxu0 %v470
        %v1197 = vpop.f32.mrf.mxu0
        %v1198 = vadd.f32 0.0, %v1197
        %v1199 = vpop.f32.mrf.mxu0
        %1200 = vmatprep.mubr.f32.mxu0 0.0
        %1201 = vmatmul.mubr.f32.gmra.mxu0 %v473
        %v1202 = vpop.f32.mrf.mxu0
        %v1203 = vadd.f32 0.0, %v1202
        %v1204 = vpop.f32.mrf.mxu0
        %1205 = vmatprep.mubr.f32.mxu0 0.0
        %1206 = vmatmul.mubr.f32.gmra.mxu0 %v476
        %v1207 = vpop.f32.mrf.mxu0
        %v1208 = vadd.f32 0.0, %v1207
        %v1209 = vpop.f32.mrf.mxu0
        %1210 = vmatprep.mubr.f32.mxu0 0.0
        %1211 = vmatmul.mubr.f32.gmra.mxu0 %v479
        %v1212 = vpop.f32.mrf.mxu0
        %v1213 = vadd.f32 0.0, %v1212
        %v1214 = vpop.f32.mrf.mxu0
        %1215 = vmatprep.mubr.f32.mxu0 0.0
        %1216 = vmatmul.mubr.f32.gmra.mxu0 %v482
        %v1217 = vpop.f32.mrf.mxu0
        %v1218 = vadd.f32 0.0, %v1217
        %v1219 = vpop.f32.mrf.mxu0
        %1220 = vmatprep.mubr.f32.mxu0 0.0
        %1221 = vmatmul.mubr.f32.gmra.mxu0 %v485
        %v1222 = vpop.f32.mrf.mxu0
        %v1223 = vadd.f32 0.0, %v1222
        %v1224 = vpop.f32.mrf.mxu0
        %1225 = vmatprep.mubr.f32.mxu0 0.0
        %1226 = vmatmul.mubr.f32.gmra.mxu0 %v488
        %v1227 = vpop.f32.mrf.mxu0
        %v1228 = vadd.f32 0.0, %v1227
        %v1229 = vpop.f32.mrf.mxu0
        %1230 = vmatprep.mubr.f32.mxu0 0.0
        %1231 = vmatmul.mubr.f32.gmra.mxu0 %v491
        %v1232 = vpop.f32.mrf.mxu0
        %v1233 = vadd.f32 0.0, %v1232
        %v1234 = vpop.f32.mrf.mxu0
        %1235 = vdwg.mxu0
        %v1236 = vmul.f32 %v1198, %v1198
        %v1237 = vmul.f32 %v1203, %v1203
        %v1238 = vmul.f32 %v1208, %v1208
        %v1239 = vmul.f32 %v1213, %v1213
        %v1240 = vmul.f32 %v1218, %v1218
        %v1241 = vmul.f32 %v1223, %v1223
        %v1242 = vmul.f32 %v1228, %v1228
        %v1243 = vmul.f32 %v1233, %v1233
        %1252 = vrot.lane.b32.xlu0 %v1236, 1
        %v1253 = vpop.permute.xlu0 %1252
        %1254 = vrot.lane.b32.xlu0 %v1237, 1
        %v1255 = vpop.permute.xlu0 %1254
        %1256 = vrot.lane.b32.xlu0 %v1238, 1
        %v1257 = vpop.permute.xlu0 %1256
        %1258 = vrot.lane.b32.xlu0 %v1239, 1
        %v1259 = vpop.permute.xlu0 %1258
        %1260 = vrot.lane.b32.xlu0 %v1240, 1
        %v1261 = vpop.permute.xlu0 %1260
        %1262 = vrot.lane.b32.xlu0 %v1241, 1
        %v1263 = vpop.permute.xlu0 %1262
        %1264 = vrot.lane.b32.xlu0 %v1242, 1
        %v1265 = vpop.permute.xlu0 %1264
        %1266 = vrot.lane.b32.xlu0 %v1243, 1
        %v1267 = vpop.permute.xlu0 %1266
        %v1276 = vsub.f32 %v1198, %v1253
        %v1277 = vsub.f32 %v1203, %v1255
        %v1278 = vsub.f32 %v1208, %v1257
        %v1279 = vsub.f32 %v1213, %v1259
        %v1280 = vsub.f32 %v1218, %v1261
        %v1281 = vsub.f32 %v1223, %v1263
        %v1282 = vsub.f32 %v1228, %v1265
        %v1283 = vsub.f32 %v1233, %v1267
        %v1284 = vmax.f32 %v1276, 0.0
        %v1285 = vmax.f32 %v1277, 0.0
        %v1286 = vmax.f32 %v1278, 0.0
        %v1287 = vmax.f32 %v1279, 0.0
        %v1288 = vmax.f32 %v1280, 0.0
        %v1289 = vmax.f32 %v1281, 0.0
        %v1290 = vmax.f32 %v1282, 0.0
        %v1291 = vmax.f32 %v1283, 0.0
        %v1292 = vadd.f32 %v1284, 1e-05
        %v1293 = vadd.f32 %v1285, 1e-05
        %v1294 = vadd.f32 %v1286, 1e-05
        %v1295 = vadd.f32 %v1287, 1e-05
        %v1296 = vadd.f32 %v1288, 1e-05
        %v1297 = vadd.f32 %v1289, 1e-05
        %v1298 = vadd.f32 %v1290, 1e-05
        %v1299 = vadd.f32 %v1291, 1e-05
        %v1300 = vrsqrt.pop %v1292
        %v1301 = vrsqrt.pop %v1293
        %v1302 = vrsqrt.pop %v1294
        %v1303 = vrsqrt.pop %v1295
        %v1304 = vrsqrt.pop %v1296
        %v1305 = vrsqrt.pop %v1297
        %v1306 = vrsqrt.pop %v1298
        %v1307 = vrsqrt.pop %v1299
        %1316 = vrot.lane.b32.xlu0 %v1059, 1
        %v1317 = vpop.permute.xlu0 %1316
        %1318 = vrot.lane.b32.xlu0 %v1060, 1
        %v1319 = vpop.permute.xlu0 %1318
        %1320 = vrot.lane.b32.xlu0 %v1061, 1
        %v1321 = vpop.permute.xlu0 %1320
        %1322 = vrot.lane.b32.xlu0 %v1062, 1
        %v1323 = vpop.permute.xlu0 %1322
        %1324 = vrot.lane.b32.xlu0 %v1063, 1
        %v1325 = vpop.permute.xlu0 %1324
        %1326 = vrot.lane.b32.xlu0 %v1064, 1
        %v1327 = vpop.permute.xlu0 %1326
        %1328 = vrot.lane.b32.xlu0 %v1065, 1
        %v1329 = vpop.permute.xlu0 %1328
        %1330 = vrot.lane.b32.xlu0 %v1066, 1
        %v1331 = vpop.permute.xlu0 %1330
        %v1340 = vmul.f32 %v1300, %v1317
        %v1341 = vmul.f32 %v1301, %v1319
        %v1342 = vmul.f32 %v1302, %v1321
        %v1343 = vmul.f32 %v1303, %v1323
        %v1344 = vmul.f32 %v1304, %v1325
        %v1345 = vmul.f32 %v1305, %v1327
        %v1346 = vmul.f32 %v1306, %v1329
        %v1347 = vmul.f32 %v1307, %v1331
        %1356 = vrot.lane.b32.xlu0 %v1340, 127
        %v1357 = vpop.permute.xlu0 %1356
        %1358 = vrot.lane.b32.xlu0 %v1341, 127
        %v1359 = vpop.permute.xlu0 %1358
        %1360 = vrot.lane.b32.xlu0 %v1342, 127
        %v1361 = vpop.permute.xlu0 %1360
        %1362 = vrot.lane.b32.xlu0 %v1343, 127
        %v1363 = vpop.permute.xlu0 %1362
        %1364 = vrot.lane.b32.xlu0 %v1344, 127
        %v1365 = vpop.permute.xlu0 %1364
        %1366 = vrot.lane.b32.xlu0 %v1345, 127
        %v1367 = vpop.permute.xlu0 %1366
        %1368 = vrot.lane.b32.xlu0 %v1346, 127
        %v1369 = vpop.permute.xlu0 %1368
        %1370 = vrot.lane.b32.xlu0 %v1347, 127
        %v1371 = vpop.permute.xlu0 %1370
        %v1380 = vmul.f32 %v1198, %v1357
        %v1381 = vmul.f32 %v1203, %v1359
        %v1382 = vmul.f32 %v1208, %v1361
        %v1383 = vmul.f32 %v1213, %v1363
        %v1384 = vmul.f32 %v1218, %v1365
        %v1385 = vmul.f32 %v1223, %v1367
        %v1386 = vmul.f32 %v1228, %v1369
        %v1387 = vmul.f32 %v1233, %v1371
        %v1388 = vsub.f32 %v1067, %v1380
        %v1389 = vsub.f32 %v1068, %v1381
        %v1390 = vsub.f32 %v1069, %v1382
        %v1391 = vsub.f32 %v1070, %v1383
        %v1392 = vsub.f32 %v1071, %v1384
        %v1393 = vsub.f32 %v1072, %v1385
        %v1394 = vsub.f32 %v1073, %v1386
        %v1395 = vsub.f32 %v1074, %v1387
        %1396 = vset.pattern.permute.xlu0 1
        %1397 = vperm.xlu0 %1396, %v1340
        %v1398 = vpop.permute.xlu0 %1397
        %1400 = vset.pattern.permute.xlu0 1
        %1401 = vperm.xlu0 %1400, %v1341
        %v1402 = vpop.permute.xlu0 %1401
        %1404 = vset.pattern.permute.xlu0 1
        %1405 = vperm.xlu0 %1404, %v1342
        %v1406 = vpop.permute.xlu0 %1405
        %1408 = vset.pattern.permute.xlu0 1
        %1409 = vperm.xlu0 %1408, %v1343
        %v1410 = vpop.permute.xlu0 %1409
        %1412 = vset.pattern.permute.xlu0 1
        %1413 = vperm.xlu0 %1412, %v1344
        %v1414 = vpop.permute.xlu0 %1413
        %1416 = vset.pattern.permute.xlu0 1
        %1417 = vperm.xlu0 %1416, %v1345
        %v1418 = vpop.permute.xlu0 %1417
        %1420 = vset.pattern.permute.xlu0 1
        %1421 = vperm.xlu0 %1420, %v1346
        %v1422 = vpop.permute.xlu0 %1421
        %1424 = vset.pattern.permute.xlu0 1
        %1425 = vperm.xlu0 %1424, %v1347
        %v1426 = vpop.permute.xlu0 %1425
        %v1428 = vmul.f32 %v1029, %v1398
        %v1429 = vmul.f32 %v1032, %v1402
        %v1430 = vmul.f32 %v1037, %v1406
        %v1431 = vmul.f32 %v1040, %v1410
        %v1432 = vmul.f32 %v1045, %v1414
        %v1433 = vmul.f32 %v1048, %v1418
        %v1434 = vmul.f32 %v1053, %v1422
        %v1435 = vmul.f32 %v1056, %v1426
        %1437 = vset.pattern.permute.xlu0 0
        %1438 = vperm.xlu0 %1437, %v1388
        %v1439 = vpop.permute.xlu0 %1438
        %1442 = vset.pattern.permute.xlu0 0
        %1443 = vperm.xlu0 %1442, %v1389
        %v1444 = vpop.permute.xlu0 %1443
        %1447 = vset.pattern.permute.xlu0 0
        %1448 = vperm.xlu0 %1447, %v1390
        %v1449 = vpop.permute.xlu0 %1448
        %1452 = vset.pattern.permute.xlu0 0
        %1453 = vperm.xlu0 %1452, %v1391
        %v1454 = vpop.permute.xlu0 %1453
        %1457 = vset.pattern.permute.xlu0 0
        %1458 = vperm.xlu0 %1457, %v1392
        %v1459 = vpop.permute.xlu0 %1458
        %1462 = vset.pattern.permute.xlu0 0
        %1463 = vperm.xlu0 %1462, %v1393
        %v1464 = vpop.permute.xlu0 %1463
        %1467 = vset.pattern.permute.xlu0 0
        %1468 = vperm.xlu0 %1467, %v1394
        %v1469 = vpop.permute.xlu0 %1468
        %1472 = vset.pattern.permute.xlu0 0
        %1473 = vperm.xlu0 %1472, %v1395
        %v1474 = vpop.permute.xlu0 %1473
        %v1476 = vadd.f32 %v1428, %v1439
        %v1477 = vadd.f32 %v1429, %v1444
        %v1478 = vadd.f32 %v1430, %v1449
        %v1479 = vadd.f32 %v1431, %v1454
        %v1480 = vadd.f32 %v1432, %v1459
        %v1481 = vadd.f32 %v1433, %v1464
        %v1482 = vadd.f32 %v1434, %v1469
        %v1483 = vadd.f32 %v1435, %v1474
        %v1484 = vxor.u32 %v1476, 2147483648
        %v1485 = vxor.u32 %v1477, 2147483648
        %v1486 = vxor.u32 %v1478, 2147483648
        %v1487 = vxor.u32 %v1479, 2147483648
        %v1488 = vxor.u32 %v1480, 2147483648
        %v1489 = vxor.u32 %v1481, 2147483648
        %v1490 = vxor.u32 %v1482, 2147483648
        %v1491 = vxor.u32 %v1483, 2147483648
        %v1492 = vmul.f32 %v1484, 1.442695
        %v1493 = vpow.pop %v1492
        %v1494 = vmul.f32 %v1485, 1.442695
        %v1495 = vpow.pop %v1494
        %v1496 = vmul.f32 %v1486, 1.442695
        %v1497 = vpow.pop %v1496
        %v1498 = vmul.f32 %v1487, 1.442695
        %v1499 = vpow.pop %v1498
        %v1500 = vmul.f32 %v1488, 1.442695
        %v1501 = vpow.pop %v1500
        %v1502 = vmul.f32 %v1489, 1.442695
        %v1503 = vpow.pop %v1502
        %v1504 = vmul.f32 %v1490, 1.442695
        %v1505 = vpow.pop %v1504
        %v1506 = vmul.f32 %v1491, 1.442695
        %v1507 = vpow.pop %v1506
        %v1508 = vadd.f32 %v1493, 1.0
        %v1509 = vadd.f32 %v1495, 1.0
        %v1510 = vadd.f32 %v1497, 1.0
        %v1511 = vadd.f32 %v1499, 1.0
        %v1512 = vadd.f32 %v1501, 1.0
        %v1513 = vadd.f32 %v1503, 1.0
        %v1514 = vadd.f32 %v1505, 1.0
        %v1515 = vadd.f32 %v1507, 1.0
        %v1516 = vrcp.pop %v1508
        %v1517 = vmul.f32 1.0, %v1516
        %v1518 = vrcp.pop %v1509
        %v1519 = vmul.f32 1.0, %v1518
        %v1520 = vrcp.pop %v1510
        %v1521 = vmul.f32 1.0, %v1520
        %v1522 = vrcp.pop %v1511
        %v1523 = vmul.f32 1.0, %v1522
        %v1524 = vrcp.pop %v1512
        %v1525 = vmul.f32 1.0, %v1524
        %v1526 = vrcp.pop %v1513
        %v1527 = vmul.f32 1.0, %v1526
        %v1528 = vrcp.pop %v1514
        %v1529 = vmul.f32 1.0, %v1528
        %v1530 = vrcp.pop %v1515
        %v1531 = vmul.f32 1.0, %v1530
        %v1532 = vmul.f32 %v1476, %v1517
        %v1533 = vmul.f32 %v1477, %v1519
        %v1534 = vmul.f32 %v1478, %v1521
        %v1535 = vmul.f32 %v1479, %v1523
        %v1536 = vmul.f32 %v1480, %v1525
        %v1537 = vmul.f32 %v1481, %v1527
        %v1538 = vmul.f32 %v1482, %v1529
        %v1539 = vmul.f32 %v1483, %v1531
        %v1540 = vlaneseq
        %v1541 = vand.u32 %v1540, 127
        %vm1542 = vcmp.gt.s32.totalorder %v1541, 0
        %v1543 = vsel %vm1542, 1, 0
        %v1544 = vcvt.s32.f32 %v1543
        %vm1545 = vcmp.lt.s32.totalorder %v1541, 127
        %v1546 = vsel %vm1545, 1, 0
        %v1547 = vcvt.s32.f32 %v1546
        %1548 = vrot.lane.b32.xlu0 %v1532, 1
        %v1549 = vpop.permute.xlu0 %1548
        %1550 = vrot.lane.b32.xlu0 %v1533, 1
        %v1551 = vpop.permute.xlu0 %1550
        %1552 = vrot.lane.b32.xlu0 %v1534, 1
        %v1553 = vpop.permute.xlu0 %1552
        %1554 = vrot.lane.b32.xlu0 %v1535, 1
        %v1555 = vpop.permute.xlu0 %1554
        %1556 = vrot.lane.b32.xlu0 %v1536, 1
        %v1557 = vpop.permute.xlu0 %1556
        %1558 = vrot.lane.b32.xlu0 %v1537, 1
        %v1559 = vpop.permute.xlu0 %1558
        %1560 = vrot.lane.b32.xlu0 %v1538, 1
        %v1561 = vpop.permute.xlu0 %1560
        %1562 = vrot.lane.b32.xlu0 %v1539, 1
        %v1563 = vpop.permute.xlu0 %1562
        %v1564 = vmul.f32 %v1549, %v1544
        %v1565 = vmul.f32 %v1551, %v1544
        %v1566 = vmul.f32 %v1553, %v1544
        %v1567 = vmul.f32 %v1555, %v1544
        %v1568 = vmul.f32 %v1557, %v1544
        %v1569 = vmul.f32 %v1559, %v1544
        %v1570 = vmul.f32 %v1561, %v1544
        %v1571 = vmul.f32 %v1563, %v1544
        %1572 = vrot.lane.b32.xlu0 %v1532, 127
        %v1573 = vpop.permute.xlu0 %1572
        %1574 = vrot.lane.b32.xlu0 %v1533, 127
        %v1575 = vpop.permute.xlu0 %1574
        %1576 = vrot.lane.b32.xlu0 %v1534, 127
        %v1577 = vpop.permute.xlu0 %1576
        %1578 = vrot.lane.b32.xlu0 %v1535, 127
        %v1579 = vpop.permute.xlu0 %1578
        %1580 = vrot.lane.b32.xlu0 %v1536, 127
        %v1581 = vpop.permute.xlu0 %1580
        %1582 = vrot.lane.b32.xlu0 %v1537, 127
        %v1583 = vpop.permute.xlu0 %1582
        %1584 = vrot.lane.b32.xlu0 %v1538, 127
        %v1585 = vpop.permute.xlu0 %1584
        %1586 = vrot.lane.b32.xlu0 %v1539, 127
        %v1587 = vpop.permute.xlu0 %1586
        %v1588 = vmul.f32 %v1573, %v1547
        %v1589 = vmul.f32 %v1575, %v1547
        %v1590 = vmul.f32 %v1577, %v1547
        %v1591 = vmul.f32 %v1579, %v1547
        %v1592 = vmul.f32 %v1581, %v1547
        %v1593 = vmul.f32 %v1583, %v1547
        %v1594 = vmul.f32 %v1585, %v1547
        %v1595 = vmul.f32 %v1587, %v1547
        %v1596 = vpack.c.bf16 %v1565, %v1564
        %v1597 = vpack.c.bf16 %v1567, %v1566
        %v1598 = vpack.c.bf16 %v1569, %v1568
        %v1599 = vpack.c.bf16 %v1571, %v1570
        %v1600 = vpack.c.bf16 %v1533, %v1532
        %v1601 = vpack.c.bf16 %v1535, %v1534
        %v1602 = vpack.c.bf16 %v1537, %v1536
        %v1603 = vpack.c.bf16 %v1539, %v1538
        %v1604 = vpack.c.bf16 %v1589, %v1588
        %v1605 = vpack.c.bf16 %v1591, %v1590
        %v1606 = vpack.c.bf16 %v1593, %v1592
        %v1607 = vpack.c.bf16 %v1595, %v1594
        %v1608 = vld [vmem:[%s8] sm:$0xff]
        %v1609 = vld [vmem:[%s8 + $0x8] sm:$0xff]
        %v1610 = vld [vmem:[%s8 + $0x10] sm:$0xff]
        %v1611 = vld [vmem:[%s8 + $0x18] sm:$0xff]
        %v1612 = vld [vmem:[%s8 + $0x20] sm:$0xff]
        %v1613 = vld [vmem:[%s8 + $0x28] sm:$0xff]
        %v1614 = vld [vmem:[%s8 + $0x30] sm:$0xff]
        %v1615 = vld [vmem:[%s8 + $0x38] sm:$0xff]
        %v1616 = vld [vmem:[%s9] sm:$0xff]
        %v1617 = vld [vmem:[%s9 + $0x8] sm:$0xff]
        %v1618 = vld [vmem:[%s9 + $0x10] sm:$0xff]
        %v1619 = vld [vmem:[%s9 + $0x18] sm:$0xff]
        %v1620 = vld [vmem:[%s9 + $0x20] sm:$0xff]
        %v1621 = vld [vmem:[%s9 + $0x28] sm:$0xff]
        %v1622 = vld [vmem:[%s9 + $0x30] sm:$0xff]
        %v1623 = vld [vmem:[%s9 + $0x38] sm:$0xff]
        %1625 = vset.pattern.permute.xlu0 0
        %1626 = vperm.xlu0 %1625, %v1616
        %v1627 = vpop.permute.xlu0 %1626
        %1630 = vset.pattern.permute.xlu0 0
        %1631 = vperm.xlu0 %1630, %v1617
        %v1632 = vpop.permute.xlu0 %1631
        %1635 = vset.pattern.permute.xlu0 0
        %1636 = vperm.xlu0 %1635, %v1618
        %v1637 = vpop.permute.xlu0 %1636
        %1640 = vset.pattern.permute.xlu0 0
        %1641 = vperm.xlu0 %1640, %v1619
        %v1642 = vpop.permute.xlu0 %1641
        %1645 = vset.pattern.permute.xlu0 0
        %1646 = vperm.xlu0 %1645, %v1620
        %v1647 = vpop.permute.xlu0 %1646
        %1650 = vset.pattern.permute.xlu0 0
        %1651 = vperm.xlu0 %1650, %v1621
        %v1652 = vpop.permute.xlu0 %1651
        %1655 = vset.pattern.permute.xlu0 0
        %1656 = vperm.xlu0 %1655, %v1622
        %v1657 = vpop.permute.xlu0 %1656
        %1660 = vset.pattern.permute.xlu0 0
        %1661 = vperm.xlu0 %1660, %v1623
        %v1662 = vpop.permute.xlu0 %1661
        %v1672 = vunpack.c.l.b16 %v1608
        %v1673 = vunpack.c.h.b16 %v1608
        %v1674 = vunpack.c.l.b16 %v1609
        %v1675 = vunpack.c.h.b16 %v1609
        %v1676 = vunpack.c.l.b16 %v1610
        %v1677 = vunpack.c.h.b16 %v1610
        %v1678 = vunpack.c.l.b16 %v1611
        %v1679 = vunpack.c.h.b16 %v1611
        %v1680 = vunpack.c.l.b16 %v1612
        %v1681 = vunpack.c.h.b16 %v1612
        %v1682 = vunpack.c.l.b16 %v1613
        %v1683 = vunpack.c.h.b16 %v1613
        %v1684 = vunpack.c.l.b16 %v1614
        %v1685 = vunpack.c.h.b16 %v1614
        %v1686 = vunpack.c.l.b16 %v1615
        %v1687 = vunpack.c.h.b16 %v1615
        %v1688 = vpack.c.b16 %v1674, %v1672
        %v1689 = vpack.c.b16 %v1675, %v1673
        %v1690 = vpack.c.b16 %v1678, %v1676
        %v1691 = vpack.c.b16 %v1679, %v1677
        %v1692 = vpack.c.b16 %v1682, %v1680
        %v1693 = vpack.c.b16 %v1683, %v1681
        %v1694 = vpack.c.b16 %v1686, %v1684
        %v1695 = vpack.c.b16 %v1687, %v1685
        %v1701 = vsel %vm468, %v1689, 0
        %v1704 = vsel %vm468, %v1691, 0
        %v1707 = vsel %vm468, %v1693, 0
        %v1710 = vsel %vm468, %v1695, 0
        %1712 = vmatprep.subr.bf16.mxu0 0
        %1713 = vmatpush1.bf16.msra.mxu0 %v1603
        %1714 = vmatprep.subr.bf16.mxu0 0
        %1715 = vmatpush1.bf16.msra.mxu0 %v1602
        %1716 = vmatprep.subr.bf16.mxu0 0
        %1717 = vmatpush1.bf16.msra.mxu0 %v1601
        %1718 = vmatprep.subr.bf16.mxu0 0
        %1719 = vmatpush1.bf16.msra.mxu0 %v1600
        %1720 = vmatprep.subr.bf16.mxu0 0
        %1721 = vmatpush1.bf16.msra.mxu0 %v1599
        %1722 = vmatprep.subr.bf16.mxu0 0
        %1723 = vmatpush1.bf16.msra.mxu0 %v1598
        %1724 = vmatprep.subr.bf16.mxu0 0
        %1725 = vmatpush1.bf16.msra.mxu0 %v1597
        %1726 = vmatprep.subr.bf16.mxu0 0
        %1727 = vmatpush1.bf16.msra.mxu0 %v1596
        %1728 = vmatprep.subr.bf16.mxu0 0
        %1729 = vmatpush2.bf16.msra.mxu0 0
        %1730 = vmatprep.subr.bf16.mxu0 0
        %1731 = vmatpush2.bf16.msra.mxu0 0
        %1732 = vmatprep.subr.bf16.mxu0 0
        %1733 = vmatpush2.bf16.msra.mxu0 0
        %1734 = vmatprep.subr.bf16.mxu0 0
        %1735 = vmatpush2.bf16.msra.mxu0 0
        %1736 = vmatprep.subr.bf16.mxu0 0
        %1737 = vmatpush2.bf16.msra.mxu0 %v1607
        %1738 = vmatprep.subr.bf16.mxu0 0
        %1739 = vmatpush2.bf16.msra.mxu0 %v1606
        %1740 = vmatprep.subr.bf16.mxu0 0
        %1741 = vmatpush2.bf16.msra.mxu0 %v1605
        %1742 = vmatprep.subr.bf16.mxu0 0
        %1743 = vmatpush2.bf16.msra.mxu0 %v1604
        %1744 = vmatprep.mubr.bf16.mxu0 %v1701
        %1745 = vmatmul.mubr.bf16.gmra.mxu0 %v1688
        %v1746 = vpop.f32.mrf.mxu0
        %v1747 = vadd.f32 %v1627, %v1746
        %v1748 = vpop.f32.mrf.mxu0
        %v1749 = vpop.f32.mrf.mxu0
        %v1750 = vadd.f32 %v1632, %v1749
        %v1751 = vpop.f32.mrf.mxu0
        %1752 = vmatprep.mubr.bf16.mxu0 %v1704
        %1753 = vmatmul.mubr.bf16.gmra.mxu0 %v1690
        %v1754 = vpop.f32.mrf.mxu0
        %v1755 = vadd.f32 %v1637, %v1754
        %v1756 = vpop.f32.mrf.mxu0
        %v1757 = vpop.f32.mrf.mxu0
        %v1758 = vadd.f32 %v1642, %v1757
        %v1759 = vpop.f32.mrf.mxu0
        %1760 = vmatprep.mubr.bf16.mxu0 %v1707
        %1761 = vmatmul.mubr.bf16.gmra.mxu0 %v1692
        %v1762 = vpop.f32.mrf.mxu0
        %v1763 = vadd.f32 %v1647, %v1762
        %v1764 = vpop.f32.mrf.mxu0
        %v1765 = vpop.f32.mrf.mxu0
        %v1766 = vadd.f32 %v1652, %v1765
        %v1767 = vpop.f32.mrf.mxu0
        %1768 = vmatprep.mubr.bf16.mxu0 %v1710
        %1769 = vmatmul.mubr.bf16.gmra.mxu0 %v1694
        %v1770 = vpop.f32.mrf.mxu0
        %v1771 = vadd.f32 %v1657, %v1770
        %v1772 = vpop.f32.mrf.mxu0
        %v1773 = vpop.f32.mrf.mxu0
        %v1774 = vadd.f32 %v1662, %v1773
        %v1775 = vpop.f32.mrf.mxu0
        %1776 = vdwg.mxu0
        %v1777 = vadd.f32 %v379, %v1747
        %v1778 = vadd.f32 %v380, %v1750
        %v1779 = vadd.f32 %v381, %v1755
        %v1780 = vadd.f32 %v382, %v1758
        %v1781 = vadd.f32 %v383, %v1763
        %v1782 = vadd.f32 %v384, %v1766
        %v1783 = vadd.f32 %v385, %v1771
        %v1784 = vadd.f32 %v386, %v1774
        %1785 = vst [vmem:[%s367] sm:$0xff] %v1777
        %1786 = vst [vmem:[%s367 + $0x8] sm:$0xff] %v1778
        %1787 = vst [vmem:[%s367 + $0x10] sm:$0xff] %v1779
        %1788 = vst [vmem:[%s367 + $0x18] sm:$0xff] %v1780
        %1789 = vst [vmem:[%s367 + $0x20] sm:$0xff] %v1781
        %1790 = vst [vmem:[%s367 + $0x28] sm:$0xff] %v1782
        %1791 = vst [vmem:[%s367 + $0x30] sm:$0xff] %v1783
        %1792 = vst [vmem:[%s367 + $0x38] sm:$0xff] %v1784
        %s1793 = sand.u32 %s252, 1
        %s1794 = scalar_lea.sflag [#allocation3], %s1793
        %s1795 = sand.u32 %s252, 1
        %s1796 = smul.addr %s1795, 64
        %s1797 = scalar_lea.vmem [#allocation2], %s1796
        // Predicated region
        $region61: #{tpu_custom_call.1} parent=59 // pred_check
          %p1798 = pneg %p262
        $region62: #{tpu_custom_call.1} parent=59 // pred_check_branch
          %1800 = sbr.rel (%p1798) target = $region64
        $region63: #{tpu_custom_call.1} parent=59 // pred_region
          %s1802 = ssub.s32 1024, 1024
          %1803 = vsyncadd %s1794, %s1802
          %s1804 = smul.addr %s24, 8
          %s1805 = smul.addr %s1804, 128
          %s1806 = scalar_lea.hbm %s10, %s1805
          %s1807 = sshll.u32 %s1797, 4
          %s1808 = int_to_ptr.vmem [resolvable:$true] %s1807
          %1813 = dma.vmem_to_hbm [thread:$0]  %s1808, 1024, %s1806, %s1794, 128, 128, 8
        $region64: #{tpu_custom_call.1} parent=59 // pred_fallthru
          _
      $region60: #{tpu_custom_call.1} parent=5 // pred_fallthru
        _
      %p1814 = scmp.le.s32.totalorder 2, %s19
      // Predicated region
      $region65: #{tpu_custom_call.1} parent=5 // pred_check
        %p1815 = pneg %p1814
      $region66: #{tpu_custom_call.1} parent=5 // pred_check_branch
        %1817 = sbr.rel (%p1815) target = $region68
      $region67: #{tpu_custom_call.1} parent=5 // pred_region
        %s1818 = ssub.s32 %s19, 2
        // Predicated region
        $region69: #{tpu_custom_call.1} parent=67 // pred_check
          %p1819 = pneg %p268
        $region70: #{tpu_custom_call.1} parent=67 // pred_check_branch
          %1821 = sbr.rel (%p1819) target = $region72
        $region71: #{tpu_custom_call.1} parent=67 // pred_region
          %s1822 = sand.u32 %s253, 1
          %s1823 = scalar_lea.sflag [#allocation3], %s1822
          %s1824 = sand.u32 %s253, 1
          %s1825 = smul.addr %s1824, 64
          %s1826 = scalar_lea.vmem [#allocation2], %s1825
          %1827 = dma.done %s1823, 1024
        $region72: #{tpu_custom_call.1} parent=67 // pred_fallthru
          _
      $region68: #{tpu_custom_call.1} parent=5 // pred_fallthru
        _
    $region6: #{tpu_custom_call.1} parent=1 // loop_footer
      %s23 = sadd.s32 1, %s19
    $region7: #{tpu_custom_call.1} parent=1 // loop_footer_branch
      %18 = sbr.rel target = $region3
    $region8: #{tpu_custom_call.1} parent=1 // loop_exit
      _
    %1828 = vsyncpa [#allocation3], 1
    %s1829 = scalar_lea.sflag [#allocation3], 1
    %1830 = vsyncpa %s1829, 1

</llo_original>
